<compile_context>
chip_gen: v7x
topology: tpu7x:2x2x1
jax: 0.10.0
libtpu: 0.0.40
codegen_flags: <defaults>
</compile_context>

<pallas_src>
import jax
import jax.numpy as jnp
from jax.experimental import pallas as pl
from jax.experimental.pallas import tpu as pltpu

EPS = 1e-5        # BatchNorm eps
TM_MAX = 4096     # max pixel rows per grid step (sweepable)
C_PAD = 128       # all channel dims zero-padded to one 128-lane tile


def _resnet_extractor_kernel(x3_ref, w_eff_ref, w_all_ref, sh_ref, out_ref):
    # Stage 0: folded extendConv+inConv (K=3).  BN100 scale is already folded
    # into the bf16 weight; f32 MXU accumulate, then bf16 shift + ReLU.
    z = jnp.dot(x3_ref[...], w_eff_ref[...],
                preferred_element_type=jnp.float32)                  # (TM, 128) f32
    x = jnp.maximum(z.astype(jnp.bfloat16) + sh_ref[0:1, :], 0.0)    # res_100 (bf16)

    def stage(v, i):
        # 1x1 conv as bf16 MXU matmul (BN scale folded into the weight, f32
        # accumulate) + bf16 shift (conv bias + BN) + ReLU, all in bf16.
        zz = jnp.dot(v, w_all_ref[i], preferred_element_type=jnp.float32)
        return jnp.maximum(zz.astype(jnp.bfloat16) + sh_ref[i + 1:i + 2, :], 0.0)

    res_64 = stage(x, 0)               # conv1   -> BN64  -> relu
    res_32 = stage(res_64, 1)          # conv2   -> BN32  -> relu
    res_16 = stage(res_32, 2)          # conv3   -> BN16  -> relu
    y = res_32 + stage(res_16, 3)      # conv_2  -> BN32  -> relu -> + res_32
    y = res_64 + stage(y, 4)           # conv_1  -> BN64  -> relu -> + res_64
    out_ref[...] = stage(y, 5)         # OutConv -> BN100 -> relu  (bf16 store)


def init_params(key):
    """Deterministic synthetic parameters (shapes from the module __init__)."""
    ks = jax.random.split(key, 12)

    def conv(k, cin, cout):
        kw, kb = jax.random.split(k)
        bound = 1.0 / jnp.sqrt(float(cin))
        w = jax.random.uniform(kw, (cin, cout), jnp.float32, -bound, bound)
        b = jax.random.uniform(kb, (cout,), jnp.float32, -bound, bound)
        return w, b

    def bn(k, c):
        k1, k2, k3, k4 = jax.random.split(k, 4)
        return dict(
            gamma=jax.random.uniform(k1, (c,), jnp.float32, 0.5, 1.5),
            beta=jax.random.uniform(k2, (c,), jnp.float32, -0.5, 0.5),
            mean=jax.random.uniform(k3, (c,), jnp.float32, -0.5, 0.5),
            var=jax.random.uniform(k4, (c,), jnp.float32, 0.5, 1.5),
        )

    p = {}
    p['w_ext'], p['b_ext'] = conv(ks[0], 1, 64)        # Conv2d(1, 64, (1,1))
    p['w_in'], p['b_in'] = conv(ks[1], 192, 100)       # Conv2d(64,100,(3,1)) stacked (3*64,100)
    p['w1'], p['b1'] = conv(ks[2], 100, 64)            # conv1
    p['w2'], p['b2'] = conv(ks[3], 64, 32)             # conv2
    p['w3'], p['b3'] = conv(ks[4], 32, 16)             # conv3
    p['w_c2'], p['b_c2'] = conv(ks[5], 16, 32)         # conv_2
    p['w_c1'], p['b_c1'] = conv(ks[6], 32, 64)         # conv_1
    p['w_out'], p['b_out'] = conv(ks[7], 64, 100)      # OutConv
    p['bn100'] = bn(ks[8], 100)
    p['bn64'] = bn(ks[9], 64)
    p['bn32'] = bn(ks[10], 32)
    p['bn16'] = bn(ks[11], 16)
    return p


def _pick_tm(m, tm_max=TM_MAX, tm_min=128, min_steps=4):
    """Largest power-of-two tile <= tm_max keeping >= min_steps grid steps
    (>= 2 steady-state pipeline steps per TensorCore on v7x megacore)."""
    tm = tm_max
    while tm > tm_min and pl.cdiv(m, tm) < min_steps:
        tm //= 2
    return tm


def resnet_extractor(x, p, *, channels_last=False):
    b, c, w, h = x.shape
    assert c == 1, "ResNetExtractor expects a single input channel"
    wo = w - 2                                         # (3,1) valid conv along W
    x2 = x[:, 0]                                       # (B, W, H)
    # im2col for the (3,1) window: 3 shifted copies along W.
    cols = jnp.stack([x2[:, k:k + wo, :] for k in range(3)], axis=-1)  # (B, W-2, H, 3)
    m = b * wo * h
    tm = _pick_tm(m)
    m_pad = pl.cdiv(m, tm) * tm
    x3 = jnp.pad(cols.reshape(m, 3), ((0, m_pad - m), (0, 0))).astype(jnp.bfloat16)

    # eval-mode BN folded to per-channel (scale, shift); scale goes into the
    # weight columns, shift (conv bias + BN) stays as a tiny packed operand.
    def fold(bias, bnp):
        s = bnp['gamma'] / jnp.sqrt(bnp['var'] + EPS)
        return s, s * (bias - bnp['mean']) + bnp['beta']

    # ---- fold extendConv (1->64) into inConv (64->100, (3,1)) ----
    we, be, w_in = p['w_ext'], p['b_ext'], p['w_in']
    w_eff = jnp.concatenate(
        [we @ w_in[k * 64:(k + 1) * 64] for k in range(3)], axis=0)            # (3, 100)
    b_eff = p['b_in'] + sum(be @ w_in[k * 64:(k + 1) * 64] for k in range(3))  # (100,)

    s0, t0 = fold(b_eff, p['bn100'])
    w_eff_p = jnp.pad(w_eff * s0[None, :],
                      ((0, 0), (0, C_PAD - 100))).astype(jnp.bfloat16)         # (3, 128) bf16
    sh_rows = [jnp.pad(t0, (0, C_PAD - 100))]

    convs = [
        (p['w1'], p['b1'], p['bn64']),      # conv1
        (p['w2'], p['b2'], p['bn32']),      # conv2
        (p['w3'], p['b3'], p['bn16']),      # conv3
        (p['w_c2'], p['b_c2'], p['bn32']),  # conv_2
        (p['w_c1'], p['b_c1'], p['bn64']),  # conv_1
        (p['w_out'], p['b_out'], p['bn100']),  # OutConv
    ]
    w_rows = []
    for wgt, bias, bnp in convs:
        s, t = fold(bias, bnp)
        cin, cout = wgt.shape
        # BN scale folded into the weight columns; zero-pad to 128x128 lanes
        # (zero cols + zero shifts keep padded lanes exactly 0 through ReLU).
        w_rows.append(jnp.pad(wgt * s[None, :], ((0, C_PAD - cin), (0, C_PAD - cout))))
        sh_rows.append(jnp.pad(t, (0, C_PAD - cout)))
    w_all = jnp.stack(w_rows).astype(jnp.bfloat16)                             # (6, 128, 128) bf16
    shifts = jnp.pad(jnp.stack(sh_rows), ((0, 1), (0, 0))).astype(jnp.bfloat16)  # (8, 128) bf16

    out = pl.pallas_call(
        _resnet_extractor_kernel,
        out_shape=jax.ShapeDtypeStruct((m_pad, C_PAD), jnp.bfloat16),
        grid=(m_pad // tm,),
        in_specs=[
            pl.BlockSpec((tm, 3), lambda i: (i, 0)),              # pixel-row tile
            pl.BlockSpec(w_eff_p.shape, lambda i: (0, 0)),        # params resident
            pl.BlockSpec(w_all.shape, lambda i: (0, 0, 0)),
            pl.BlockSpec(shifts.shape, lambda i: (0, 0)),
        ],
        out_specs=pl.BlockSpec((tm, C_PAD), lambda i: (i, 0)),    # lane-dense bf16 stores
        compiler_params=pltpu.CompilerParams(
            dimension_semantics=("parallel",),
            vmem_limit_bytes=48 * 1024 * 1024),
    )(x3, w_eff_p, w_all, shifts)

    out = out[:m, :100].reshape(b, wo, h, 100)        # bf16, channels-last (B, W-2, H, 100)
    if channels_last:
        return out
    # PyTorch NCHW layout; the relayout now touches only the half-size bf16 tensor.
    return out.transpose(0, 3, 1, 2)


def reference(x, p):
    """Pure-JAX f32 reference of the forward pass (eval-mode BN)."""
    hp = jax.lax.Precision.HIGHEST
    b, c, w, h = x.shape
    wo = w - 2
    x2 = x[:, 0]
    y0 = x2[..., None] * p['w_ext'][0] + p['b_ext']                 # extendConv
    z = sum(jnp.einsum('bwhc,cd->bwhd', y0[:, k:k + wo],
                       p['w_in'][k * 64:(k + 1) * 64], precision=hp)
            for k in range(3)) + p['b_in']                          # inConv

    def bn_relu(v, bnp):
        v = bnp['gamma'] * (v - bnp['mean']) / jnp.sqrt(bnp['var'] + EPS) + bnp['beta']
        return jnp.maximum(v, 0.0)

    def conv_bn_relu(v, wgt, bias, bnp):
        return bn_relu(jnp.einsum('bwhc,cd->bwhd', v, wgt, precision=hp) + bias, bnp)

    x_ = bn_relu(z, p['bn100'])
    res64 = conv_bn_relu(x_, p['w1'], p['b1'], p['bn64'])
    res32 = conv_bn_relu(res64, p['w2'], p['b2'], p['bn32'])
    res16 = conv_bn_relu(res32, p['w3'], p['b3'], p['bn16'])
    y = conv_bn_relu(res16, p['w_c2'], p['b_c2'], p['bn32'])
    y = res32 + y
    y = conv_bn_relu(y, p['w_c1'], p['b_c1'], p['bn64'])
    y = res64 + y
    y = conv_bn_relu(y, p['w_out'], p['b_out'], p['bn100'])
    return y.transpose(0, 3, 1, 2)


if __name__ == "__main__":
    key = jax.random.PRNGKey(0)
    kx, kp = jax.random.split(key)
    B, C, W, H = 2, 1, 16, 16
    x = jax.random.normal(kx, (B, C, W, H), jnp.float32)
    params = init_params(kp)

    out = jax.block_until_ready(resnet_extractor(x, params))
    assert out.shape == (B, 100, W - 2, H), out.shape

    ref = reference(x, params)
    err = float(jnp.max(jnp.abs(out.astype(jnp.float32) - ref)))
    scale = max(float(jnp.max(jnp.abs(ref))), 1.0)
    # bf16 weights (with BN scale folded), bf16 activations/affine and a bf16
    # output across 7 chained MXU stages -> allow 5% of peak magnitude.
    assert err <= 5e-2 * scale, f"max abs error {err} (scale {scale})"
    print("KERNEL_OK")
</pallas_src>

<mosaic_0001>
module attributes {stable_mosaic.version = 11 : i64} {
  func.func @_resnet_extractor_kernel(%arg0: i32, %arg1: memref<128x3xbf16, #tpu.memory_space<vmem>>, %arg2: memref<3x128xbf16, #tpu.memory_space<vmem>>, %arg3: memref<6x128x128xbf16, #tpu.memory_space<vmem>>, %arg4: memref<8x128xbf16, #tpu.memory_space<vmem>>, %arg5: memref<128x128xbf16, #tpu.memory_space<vmem>>) attributes {dimension_semantics = [#tpu.dimension_semantics<parallel>], iteration_bounds = array<i64: 4>, scalar_prefetch = 0 : i64, scratch_operands = 0 : i64, tpu.core_type = #tpu.core_type<tc>, window_params = [{transform_indices = @transform_0, window_bounds = array<i64: 128, 3>}, {pipeline_mode = #tpu.pipeline_mode<synchronous>, transform_indices = @transform_1, window_bounds = array<i64: 3, 128>}, {pipeline_mode = #tpu.pipeline_mode<synchronous>, transform_indices = @transform_2, window_bounds = array<i64: 6, 128, 128>}, {pipeline_mode = #tpu.pipeline_mode<synchronous>, transform_indices = @transform_3, window_bounds = array<i64: 8, 128>}, {transform_indices = @transform_4, window_bounds = array<i64: 128, 128>}]} {
    %c0 = arith.constant 0 : index
    %c0_0 = arith.constant 0 : index
    %0 = vector.load %arg1[%c0, %c0_0] : memref<128x3xbf16, #tpu.memory_space<vmem>>, vector<128x3xbf16>
    %c0_1 = arith.constant 0 : index
    %c0_2 = arith.constant 0 : index
    %1 = vector.load %arg2[%c0_1, %c0_2] : memref<3x128xbf16, #tpu.memory_space<vmem>>, vector<3x128xbf16>
    %cst = arith.constant dense<0.000000e+00> : vector<128x128xf32>
    %2 = tpu.matmul %0, %1, %cst {dimension_numbers = #tpu.dot_dimension_numbers<[1], [0], [0], [1], [0, 0, 1, 1], [], []>} : vector<128x3xbf16>, vector<3x128xbf16>, vector<128x128xf32> -> vector<128x128xf32>
    %3 = arith.truncf %2 : vector<128x128xf32> to vector<128x128xbf16>
    %c0_3 = arith.constant 0 : index
    %c0_4 = arith.constant 0 : index
    %4 = vector.load %arg4[%c0_3, %c0_4] : memref<8x128xbf16, #tpu.memory_space<vmem>>, vector<1x128xbf16>
    %5 = vector.broadcast %4 : vector<1x128xbf16> to vector<128x128xbf16>
    %6 = arith.addf %3, %5 : vector<128x128xbf16>
    %cst_5 = arith.constant 0.000000e+00 : bf16
    %7 = vector.broadcast %cst_5 : bf16 to vector<128x128xbf16>
    %8 = arith.maximumf %6, %7 : vector<128x128xbf16>
    %c0_6 = arith.constant 0 : index
    %c0_7 = arith.constant 0 : index
    %c0_8 = arith.constant 0 : index
    %9 = vector.load %arg3[%c0_6, %c0_7, %c0_8] : memref<6x128x128xbf16, #tpu.memory_space<vmem>>, vector<1x128x128xbf16>
    %10 = vector.shape_cast %9 : vector<1x128x128xbf16> to vector<128x128xbf16>
    %cst_9 = arith.constant dense<0.000000e+00> : vector<128x128xf32>
    %11 = tpu.matmul %8, %10, %cst_9 {dimension_numbers = #tpu.dot_dimension_numbers<[1], [0], [0], [1], [0, 0, 1, 1], [], []>} : vector<128x128xbf16>, vector<128x128xbf16>, vector<128x128xf32> -> vector<128x128xf32>
    %12 = arith.truncf %11 : vector<128x128xf32> to vector<128x128xbf16>
    %c1 = arith.constant 1 : index
    %c0_10 = arith.constant 0 : index
    %13 = vector.load %arg4[%c1, %c0_10] : memref<8x128xbf16, #tpu.memory_space<vmem>>, vector<1x128xbf16>
    %14 = vector.broadcast %13 : vector<1x128xbf16> to vector<128x128xbf16>
    %15 = arith.addf %12, %14 : vector<128x128xbf16>
    %cst_11 = arith.constant 0.000000e+00 : bf16
    %16 = vector.broadcast %cst_11 : bf16 to vector<128x128xbf16>
    %17 = arith.maximumf %15, %16 : vector<128x128xbf16>
    %c1_12 = arith.constant 1 : index
    %c0_13 = arith.constant 0 : index
    %c0_14 = arith.constant 0 : index
    %18 = vector.load %arg3[%c1_12, %c0_13, %c0_14] : memref<6x128x128xbf16, #tpu.memory_space<vmem>>, vector<1x128x128xbf16>
    %19 = vector.shape_cast %18 : vector<1x128x128xbf16> to vector<128x128xbf16>
    %cst_15 = arith.constant dense<0.000000e+00> : vector<128x128xf32>
    %20 = tpu.matmul %17, %19, %cst_15 {dimension_numbers = #tpu.dot_dimension_numbers<[1], [0], [0], [1], [0, 0, 1, 1], [], []>} : vector<128x128xbf16>, vector<128x128xbf16>, vector<128x128xf32> -> vector<128x128xf32>
    %21 = arith.truncf %20 : vector<128x128xf32> to vector<128x128xbf16>
    %c2 = arith.constant 2 : index
    %c0_16 = arith.constant 0 : index
    %22 = vector.load %arg4[%c2, %c0_16] : memref<8x128xbf16, #tpu.memory_space<vmem>>, vector<1x128xbf16>
    %23 = vector.broadcast %22 : vector<1x128xbf16> to vector<128x128xbf16>
    %24 = arith.addf %21, %23 : vector<128x128xbf16>
    %cst_17 = arith.constant 0.000000e+00 : bf16
    %25 = vector.broadcast %cst_17 : bf16 to vector<128x128xbf16>
    %26 = arith.maximumf %24, %25 : vector<128x128xbf16>
    %c2_18 = arith.constant 2 : index
    %c0_19 = arith.constant 0 : index
    %c0_20 = arith.constant 0 : index
    %27 = vector.load %arg3[%c2_18, %c0_19, %c0_20] : memref<6x128x128xbf16, #tpu.memory_space<vmem>>, vector<1x128x128xbf16>
    %28 = vector.shape_cast %27 : vector<1x128x128xbf16> to vector<128x128xbf16>
    %cst_21 = arith.constant dense<0.000000e+00> : vector<128x128xf32>
    %29 = tpu.matmul %26, %28, %cst_21 {dimension_numbers = #tpu.dot_dimension_numbers<[1], [0], [0], [1], [0, 0, 1, 1], [], []>} : vector<128x128xbf16>, vector<128x128xbf16>, vector<128x128xf32> -> vector<128x128xf32>
    %30 = arith.truncf %29 : vector<128x128xf32> to vector<128x128xbf16>
    %c3 = arith.constant 3 : index
    %c0_22 = arith.constant 0 : index
    %31 = vector.load %arg4[%c3, %c0_22] : memref<8x128xbf16, #tpu.memory_space<vmem>>, vector<1x128xbf16>
    %32 = vector.broadcast %31 : vector<1x128xbf16> to vector<128x128xbf16>
    %33 = arith.addf %30, %32 : vector<128x128xbf16>
    %cst_23 = arith.constant 0.000000e+00 : bf16
    %34 = vector.broadcast %cst_23 : bf16 to vector<128x128xbf16>
    %35 = arith.maximumf %33, %34 : vector<128x128xbf16>
    %c3_24 = arith.constant 3 : index
    %c0_25 = arith.constant 0 : index
    %c0_26 = arith.constant 0 : index
    %36 = vector.load %arg3[%c3_24, %c0_25, %c0_26] : memref<6x128x128xbf16, #tpu.memory_space<vmem>>, vector<1x128x128xbf16>
    %37 = vector.shape_cast %36 : vector<1x128x128xbf16> to vector<128x128xbf16>
    %cst_27 = arith.constant dense<0.000000e+00> : vector<128x128xf32>
    %38 = tpu.matmul %35, %37, %cst_27 {dimension_numbers = #tpu.dot_dimension_numbers<[1], [0], [0], [1], [0, 0, 1, 1], [], []>} : vector<128x128xbf16>, vector<128x128xbf16>, vector<128x128xf32> -> vector<128x128xf32>
    %39 = arith.truncf %38 : vector<128x128xf32> to vector<128x128xbf16>
    %c4 = arith.constant 4 : index
    %c0_28 = arith.constant 0 : index
    %40 = vector.load %arg4[%c4, %c0_28] : memref<8x128xbf16, #tpu.memory_space<vmem>>, vector<1x128xbf16>
    %41 = vector.broadcast %40 : vector<1x128xbf16> to vector<128x128xbf16>
    %42 = arith.addf %39, %41 : vector<128x128xbf16>
    %cst_29 = arith.constant 0.000000e+00 : bf16
    %43 = vector.broadcast %cst_29 : bf16 to vector<128x128xbf16>
    %44 = arith.maximumf %42, %43 : vector<128x128xbf16>
    %45 = arith.addf %26, %44 : vector<128x128xbf16>
    %c4_30 = arith.constant 4 : index
    %c0_31 = arith.constant 0 : index
    %c0_32 = arith.constant 0 : index
    %46 = vector.load %arg3[%c4_30, %c0_31, %c0_32] : memref<6x128x128xbf16, #tpu.memory_space<vmem>>, vector<1x128x128xbf16>
    %47 = vector.shape_cast %46 : vector<1x128x128xbf16> to vector<128x128xbf16>
    %cst_33 = arith.constant dense<0.000000e+00> : vector<128x128xf32>
    %48 = tpu.matmul %45, %47, %cst_33 {dimension_numbers = #tpu.dot_dimension_numbers<[1], [0], [0], [1], [0, 0, 1, 1], [], []>} : vector<128x128xbf16>, vector<128x128xbf16>, vector<128x128xf32> -> vector<128x128xf32>
    %49 = arith.truncf %48 : vector<128x128xf32> to vector<128x128xbf16>
    %c5 = arith.constant 5 : index
    %c0_34 = arith.constant 0 : index
    %50 = vector.load %arg4[%c5, %c0_34] : memref<8x128xbf16, #tpu.memory_space<vmem>>, vector<1x128xbf16>
    %51 = vector.broadcast %50 : vector<1x128xbf16> to vector<128x128xbf16>
    %52 = arith.addf %49, %51 : vector<128x128xbf16>
    %cst_35 = arith.constant 0.000000e+00 : bf16
    %53 = vector.broadcast %cst_35 : bf16 to vector<128x128xbf16>
    %54 = arith.maximumf %52, %53 : vector<128x128xbf16>
    %55 = arith.addf %17, %54 : vector<128x128xbf16>
    %c5_36 = arith.constant 5 : index
    %c0_37 = arith.constant 0 : index
    %c0_38 = arith.constant 0 : index
    %56 = vector.load %arg3[%c5_36, %c0_37, %c0_38] : memref<6x128x128xbf16, #tpu.memory_space<vmem>>, vector<1x128x128xbf16>
    %57 = vector.shape_cast %56 : vector<1x128x128xbf16> to vector<128x128xbf16>
    %cst_39 = arith.constant dense<0.000000e+00> : vector<128x128xf32>
    %58 = tpu.matmul %55, %57, %cst_39 {dimension_numbers = #tpu.dot_dimension_numbers<[1], [0], [0], [1], [0, 0, 1, 1], [], []>} : vector<128x128xbf16>, vector<128x128xbf16>, vector<128x128xf32> -> vector<128x128xf32>
    %59 = arith.truncf %58 : vector<128x128xf32> to vector<128x128xbf16>
    %c6 = arith.constant 6 : index
    %c0_40 = arith.constant 0 : index
    %60 = vector.load %arg4[%c6, %c0_40] : memref<8x128xbf16, #tpu.memory_space<vmem>>, vector<1x128xbf16>
    %61 = vector.broadcast %60 : vector<1x128xbf16> to vector<128x128xbf16>
    %62 = arith.addf %59, %61 : vector<128x128xbf16>
    %cst_41 = arith.constant 0.000000e+00 : bf16
    %63 = vector.broadcast %cst_41 : bf16 to vector<128x128xbf16>
    %64 = arith.maximumf %62, %63 : vector<128x128xbf16>
    %c0_42 = arith.constant 0 : index
    %c0_43 = arith.constant 0 : index
    %65 = vector.load %arg5[%c0_42, %c0_43] : memref<128x128xbf16, #tpu.memory_space<vmem>>, vector<128x128xbf16>
    tpu.vector_store %arg5[%c0_42, %c0_43], %64 {strides = array<i32>} : memref<128x128xbf16, #tpu.memory_space<vmem>>, vector<128x128xbf16>,
    return
  }
  func.func @transform_0(%arg0: i32) -> (i32, i32) {
    %c0_i32 = arith.constant 0 : i32
    %c0_i32_0 = arith.constant 0 : i32
    return %arg0, %c0_i32 : i32, i32
  }
  func.func @transform_1(%arg0: i32) -> (i32, i32) {
    %c0_i32 = arith.constant 0 : i32
    %c0_i32_0 = arith.constant 0 : i32
    %c0_i32_1 = arith.constant 0 : i32
    return %c0_i32, %c0_i32_0 : i32, i32
  }
  func.func @transform_2(%arg0: i32) -> (i32, i32, i32) {
    %c0_i32 = arith.constant 0 : i32
    %c0_i32_0 = arith.constant 0 : i32
    %c0_i32_1 = arith.constant 0 : i32
    %c0_i32_2 = arith.constant 0 : i32
    return %c0_i32, %c0_i32_0, %c0_i32_1 : i32, i32, i32
  }
  func.func @transform_3(%arg0: i32) -> (i32, i32) {
    %c0_i32 = arith.constant 0 : i32
    %c0_i32_0 = arith.constant 0 : i32
    %c0_i32_1 = arith.constant 0 : i32
    return %c0_i32, %c0_i32_0 : i32, i32
  }
  func.func @transform_4(%arg0: i32) -> (i32, i32) {
    %c0_i32 = arith.constant 0 : i32
    %c0_i32_0 = arith.constant 0 : i32
    return %arg0, %c0_i32 : i32, i32
  }
}

</mosaic_0001>

<llo_original>
// kernel: tpu_custom_call.1
$region0: #{tpu_custom_call.1}
  #allocation0 [shape = 'u32[]', space=smem, size = 0x4, offset = 0x4, fixed_abs, tag = 'smem constant byte address 0x4 - core index']
  #allocation1 [shape = 'u32[144,128]{1,0:T(1,128)}', space=vmem, size = 0x12000, scoped, tag = 'internal scratch']
  %s0 = inlined_call_operand.vmem [shape: bf16[512,3], index: 0, kind: input, shape index: {}]
  %s1 = inlined_call_operand.vmem [shape: bf16[3,128], index: 1, kind: input, shape index: {}]
  %s2 = inlined_call_operand.hbm [shape: bf16[6,128,128], index: 2, kind: input, shape index: {}]
  %s3 = inlined_call_operand.vmem [shape: bf16[8,128], index: 3, kind: input, shape index: {}]
  %s4 = inlined_call_operand.hbm [shape: bf16[512,128], index: 4, kind: output, shape index: {}]
  %s5 = sld [smem:[#allocation0]]
  $region53: #{tpu_custom_call.1} parent=0
    _
  %s7 = ssub.s32 1, %s5
  %s8 = scalar_select 0, %s7, %s5
  $region1: #{tpu_custom_call.1} parent=0
    #allocation2 [shape = 'u8[196608]{0}', space=vmem, size = 0x30000, scoped, tag = 'input window, operand 2, single buffered']
    #allocation3 [shape = 's32[2]{0}', space=sflag, size = 0x8, scoped, tag = 'scoped memory for tpu_custom_call.1']
    #allocation4 [shape = 's32[2]{0}', space=sflag, size = 0x8, scoped, tag = 'scoped memory for tpu_custom_call.1']
    #allocation5 [shape = 'u8[65536]{0}', space=vmem, size = 0x10000, scoped, tag = 'output window, operand 0']
    %9 = vsyncpa [#allocation3], 0
    %10 = vsyncpa [#allocation4], 0
    %s11 = scalar_lea.sflag [#allocation4], 1
    %12 = vsyncpa %s11, 0
    loop: start=0, step=1, limit=6
    $region2: #{tpu_custom_call.1} parent=1 // loop_pre_header
      _
    $region3: #{tpu_custom_call.1} parent=1 // loop_header
      %s14 = sphi 0, %s18
      %p15 = scmp.ge.s32.totalorder %s14, 6
      %s24 = sphi 0, %s26
      %s27 = sphi 0, %s24
      %s28 = sphi 0, %s27
      %s44 = sphi 0, %s28
      %s48 = sphi 0, %s48
      %s50 = sphi 0, %s48
      %s51 = sphi 0, %s50
      %s65 = sphi 0, %s51
      %s69 = sphi 0, %s69
      %s71 = sphi 0, %s69
      %s72 = sphi 0, %s71
      %s86 = sphi 0, %s72
      %s90 = sphi 0, %s90
      %s92 = sphi 0, %s90
      %s93 = sphi 0, %s92
      %s107 = sphi 0, %s93
      %s113 = sphi 0, %s115
      %s116 = sphi 0, %s113
      %s117 = sphi 0, %s116
      %s133 = sphi 0, %s117
    $region4: #{tpu_custom_call.1} parent=1 // loop_header_branch
      %17 = sbr.rel (%p15) target = $region8
    $region5: #{tpu_custom_call.1} parent=1 // loop_body
      %s19 = ssub.s32 %s14, 1
      %s20 = ssub.s32 %s14, 2
      %s21 = sadd.s32 %s14, 1
      %s22 = ssub.s32 %s14, %s21
      %p23 = scmp.eq.s32.totalorder %s22, 0
      %s25 = sadd.s32 %s24, 1
      %s26 = scalar_select %p23, %s24, %s25
      %p29 = pneg %p23
      %p30 = scmp.eq.s32.totalorder %s14, 3
      %p31 = por %p29, %p30
      %p32 = scmp.ne.s32.totalorder %s24, %s27
      %p33 = scmp.eq.s32.totalorder %s14, 0
      %p34 = por %p32, %p33
      %p35 = scmp.ne.s32.totalorder %s24, %s27
      %p36 = scmp.eq.s32.totalorder %s19, 3
      %p37 = por %p35, %p36
      %p38 = scmp.ne.s32.totalorder %s27, %s28
      %p39 = scmp.eq.s32.totalorder %s19, 0
      %p40 = por %p38, %p39
      %p41 = scmp.ne.s32.totalorder %s27, %s28
      %p42 = scmp.eq.s32.totalorder %s20, 3
      %p43 = por %p41, %p42
      %p45 = scmp.ne.s32.totalorder %s28, %s44
      %p46 = scmp.eq.s32.totalorder %s20, 0
      %p47 = por %p45, %p46
      %s49 = sadd.s32 %s48, 1
      %p52 = scmp.eq.s32.totalorder %s14, 3
      %p53 = scmp.ne.s32.totalorder %s48, %s50
      %p54 = scmp.eq.s32.totalorder %s14, 0
      %p55 = por %p53, %p54
      %p56 = scmp.ne.s32.totalorder %s48, %s50
      %p57 = scmp.eq.s32.totalorder %s19, 3
      %p58 = por %p56, %p57
      %p59 = scmp.ne.s32.totalorder %s50, %s51
      %p60 = scmp.eq.s32.totalorder %s19, 0
      %p61 = por %p59, %p60
      %p62 = scmp.ne.s32.totalorder %s50, %s51
      %p63 = scmp.eq.s32.totalorder %s20, 3
      %p64 = por %p62, %p63
      %p66 = scmp.ne.s32.totalorder %s51, %s65
      %p67 = scmp.eq.s32.totalorder %s20, 0
      %p68 = por %p66, %p67
      %s70 = sadd.s32 %s69, 1
      %p73 = scmp.eq.s32.totalorder %s14, 3
      %p74 = scmp.ne.s32.totalorder %s69, %s71
      %p75 = scmp.eq.s32.totalorder %s14, 0
      %p76 = por %p74, %p75
      %p77 = scmp.ne.s32.totalorder %s69, %s71
      %p78 = scmp.eq.s32.totalorder %s19, 3
      %p79 = por %p77, %p78
      %p80 = scmp.ne.s32.totalorder %s71, %s72
      %p81 = scmp.eq.s32.totalorder %s19, 0
      %p82 = por %p80, %p81
      %p83 = scmp.ne.s32.totalorder %s71, %s72
      %p84 = scmp.eq.s32.totalorder %s20, 3
      %p85 = por %p83, %p84
      %p87 = scmp.ne.s32.totalorder %s72, %s86
      %p88 = scmp.eq.s32.totalorder %s20, 0
      %p89 = por %p87, %p88
      %s91 = sadd.s32 %s90, 1
      %p94 = scmp.eq.s32.totalorder %s14, 3
      %p95 = scmp.ne.s32.totalorder %s90, %s92
      %p96 = scmp.eq.s32.totalorder %s14, 0
      %p97 = por %p95, %p96
      %p98 = scmp.ne.s32.totalorder %s90, %s92
      %p99 = scmp.eq.s32.totalorder %s19, 3
      %p100 = por %p98, %p99
      %p101 = scmp.ne.s32.totalorder %s92, %s93
      %p102 = scmp.eq.s32.totalorder %s19, 0
      %p103 = por %p101, %p102
      %p104 = scmp.ne.s32.totalorder %s92, %s93
      %p105 = scmp.eq.s32.totalorder %s20, 3
      %p106 = por %p104, %p105
      %p108 = scmp.ne.s32.totalorder %s93, %s107
      %p109 = scmp.eq.s32.totalorder %s20, 0
      %p110 = por %p108, %p109
      %s111 = ssub.s32 %s14, %s21
      %p112 = scmp.eq.s32.totalorder %s111, 0
      %s114 = sadd.s32 %s113, 1
      %s115 = scalar_select %p112, %s113, %s114
      %p118 = pneg %p112
      %p119 = scmp.eq.s32.totalorder %s14, 3
      %p120 = por %p118, %p119
      %p121 = scmp.ne.s32.totalorder %s113, %s116
      %p122 = scmp.eq.s32.totalorder %s14, 0
      %p123 = por %p121, %p122
      %p124 = scmp.ne.s32.totalorder %s113, %s116
      %p125 = scmp.eq.s32.totalorder %s19, 3
      %p126 = por %p124, %p125
      %p127 = scmp.ne.s32.totalorder %s116, %s117
      %p128 = scmp.eq.s32.totalorder %s19, 0
      %p129 = por %p127, %p128
      %p130 = scmp.ne.s32.totalorder %s116, %s117
      %p131 = scmp.eq.s32.totalorder %s20, 3
      %p132 = por %p130, %p131
      %p134 = scmp.ne.s32.totalorder %s117, %s133
      %p135 = scmp.eq.s32.totalorder %s20, 0
      %p136 = por %p134, %p135
      %p137 = scmp.le.s32.totalorder 1, %s14
      %p138 = scmp.lt.s32.totalorder %s14, 5
      %p139 = pnand %p137, %p138
      %p140 = pneg %p139
      // Predicated region
      $region9: #{tpu_custom_call.1} parent=5 // pred_check
        _
      $region10: #{tpu_custom_call.1} parent=5 // pred_check_branch
        %142 = sbr.rel (%p139) target = $region12
      $region11: #{tpu_custom_call.1} parent=5 // pred_region
        %s143 = ssub.s32 %s14, 1
        // Predicated region
        $region13: #{tpu_custom_call.1} parent=11 // pred_check
          %p144 = pneg %p61
        $region14: #{tpu_custom_call.1} parent=11 // pred_check_branch
          %146 = sbr.rel (%p144) target = $region16
        $region15: #{tpu_custom_call.1} parent=11 // pred_region
          _
        $region16: #{tpu_custom_call.1} parent=11 // pred_fallthru
          _
        // Predicated region
        $region17: #{tpu_custom_call.1} parent=11 // pred_check
          %p147 = pneg %p82
        $region18: #{tpu_custom_call.1} parent=11 // pred_check_branch
          %149 = sbr.rel (%p147) target = $region20
        $region19: #{tpu_custom_call.1} parent=11 // pred_region
          %s151 = ssub.s32 6144, 6144
          %152 = vsyncadd [#allocation3], %s151
          %s153 = sshll.u32 [#allocation2], 4
          %s154 = int_to_ptr.vmem [resolvable:$true] %s153
          %159 = dma.hbm_to_vmem [thread:$0]  %s2, 6144, %s154, [#allocation3], 64, 64, 4
        $region20: #{tpu_custom_call.1} parent=11 // pred_fallthru
          _
        // Predicated region
        $region21: #{tpu_custom_call.1} parent=11 // pred_check
          %p160 = pneg %p103
        $region22: #{tpu_custom_call.1} parent=11 // pred_check_branch
          %162 = sbr.rel (%p160) target = $region24
        $region23: #{tpu_custom_call.1} parent=11 // pred_region
          _
        $region24: #{tpu_custom_call.1} parent=11 // pred_fallthru
          _
      $region12: #{tpu_custom_call.1} parent=5 // pred_fallthru
        _
      %p163 = scmp.lt.s32.totalorder %s14, 4
      // Predicated region
      $region25: #{tpu_custom_call.1} parent=5 // pred_check
        %p164 = pneg %p163
      $region26: #{tpu_custom_call.1} parent=5 // pred_check_branch
        %166 = sbr.rel (%p164) target = $region28
      $region27: #{tpu_custom_call.1} parent=5 // pred_region
        // Predicated region
        $region29: #{tpu_custom_call.1} parent=27 // pred_check
          %p167 = pneg %p34
        $region30: #{tpu_custom_call.1} parent=27 // pred_check_branch
          %169 = sbr.rel (%p167) target = $region32
        $region31: #{tpu_custom_call.1} parent=27 // pred_region
          %s170 = smul.u32 16, %s14
          %p171 = scmp.lt.s32.totalorder %s170, 63
          %s172 = scalar_select %p171, %s170, 63
          %s173 = smul.addr %s172, 4
          %s174 = scalar_lea.vmem %s0, %s173
          %s175 = smul.u32 16, %s14
        $region32: #{tpu_custom_call.1} parent=27 // pred_fallthru
          _
      $region28: #{tpu_custom_call.1} parent=5 // pred_fallthru
        _
      %p176 = scmp.le.s32.totalorder 1, %s14
      %p177 = scmp.lt.s32.totalorder %s14, 5
      %p178 = pnand %p176, %p177
      %p179 = pneg %p178
      // Predicated region
      $region33: #{tpu_custom_call.1} parent=5 // pred_check
        _
      $region34: #{tpu_custom_call.1} parent=5 // pred_check_branch
        %181 = sbr.rel (%p178) target = $region36
      $region35: #{tpu_custom_call.1} parent=5 // pred_region
        %s182 = ssub.s32 %s14, 1
        // Predicated region
        $region37: #{tpu_custom_call.1} parent=35 // pred_check
          %p183 = pneg %p82
        $region38: #{tpu_custom_call.1} parent=35 // pred_check_branch
          %185 = sbr.rel (%p183) target = $region40
        $region39: #{tpu_custom_call.1} parent=35 // pred_region
          %186 = dma.done [#allocation3], 6144
        $region40: #{tpu_custom_call.1} parent=35 // pred_fallthru
          _
        %s187 = smul.u32 16, %s19
        %p188 = scmp.lt.s32.totalorder %s187, 63
        %s189 = scalar_select %p188, %s187, 63
        %s190 = smul.addr %s189, 4
        %s191 = scalar_lea.vmem %s0, %s190
        %p192 = pneg %p40
        %p193 = pneg %p37
        %p194 = pneg %p61
        %p195 = pneg %p58
        %p196 = pneg %p82
        %p197 = pneg %p79
        %p198 = pneg %p103
        %p199 = pneg %p100
        %p200 = pneg %p129
        %p201 = pneg %p126
        %s202 = sand.u32 %s116, 1
        %s203 = scalar_lea.sflag [#allocation4], %s202
        %s204 = sand.u32 %s116, 1
        %s205 = smul.addr %s204, 64
        %s206 = scalar_lea.vmem [#allocation5], %s205
        %s207 = smul.u32 16, %s19
        %p208 = scmp.lt.s32.totalorder %s207, 63
        %s209 = scalar_select %p208, %s207, 63
        %s210 = smul.addr %s209, 4
        %s211 = scalar_lea.vmem %s0, %s210
        %s212 = smul.u32 16, %s19
        %s213 = smul.u32 16, %s19
        %v215 = vld [vmem:[%s211] sm:$0xf]
        %v216 = vld [vmem:[%s211 + $0x4] sm:$0xf]
        %v217 = vld [vmem:[%s211 + $0x8] sm:$0xf]
        %v218 = vld [vmem:[%s211 + $0xc] sm:$0xf]
        %v219 = vld [vmem:[%s211 + $0x10] sm:$0xf]
        %v220 = vld [vmem:[%s211 + $0x14] sm:$0xf]
        %v221 = vld [vmem:[%s211 + $0x18] sm:$0xf]
        %v222 = vld [vmem:[%s211 + $0x1c] sm:$0xf]
        %v223 = vld [vmem:[%s211 + $0x20] sm:$0xf]
        %v224 = vld [vmem:[%s211 + $0x24] sm:$0xf]
        %v225 = vld [vmem:[%s211 + $0x28] sm:$0xf]
        %v226 = vld [vmem:[%s211 + $0x2c] sm:$0xf]
        %v227 = vld [vmem:[%s211 + $0x30] sm:$0xf]
        %v228 = vld [vmem:[%s211 + $0x34] sm:$0xf]
        %v229 = vld [vmem:[%s211 + $0x38] sm:$0xf]
        %v230 = vld [vmem:[%s211 + $0x3c] sm:$0xf]
        %v231 = vld [vmem:[%s1] sm:$0x3]
        %v248 = vunpack.c.l.b16 %v215
        %v249 = vunpack.c.l.b16 %v216
        %v250 = vunpack.c.l.b16 %v217
        %v251 = vunpack.c.l.b16 %v218
        %v252 = vunpack.c.l.b16 %v219
        %v253 = vunpack.c.l.b16 %v220
        %v254 = vunpack.c.l.b16 %v221
        %v255 = vunpack.c.l.b16 %v222
        %v256 = vunpack.c.l.b16 %v223
        %v257 = vunpack.c.l.b16 %v224
        %v258 = vunpack.c.l.b16 %v225
        %v259 = vunpack.c.l.b16 %v226
        %v260 = vunpack.c.l.b16 %v227
        %v261 = vunpack.c.l.b16 %v228
        %v262 = vunpack.c.l.b16 %v229
        %v263 = vunpack.c.l.b16 %v230
        %v264 = vpack.c.b16 %v249, %v248
        %v265 = vpack.c.b16 %v251, %v250
        %v266 = vpack.c.b16 %v253, %v252
        %v267 = vpack.c.b16 %v255, %v254
        %v268 = vpack.c.b16 %v257, %v256
        %v269 = vpack.c.b16 %v259, %v258
        %v270 = vpack.c.b16 %v261, %v260
        %v271 = vpack.c.b16 %v263, %v262
        %vm272 = vcmask 23552
        %v274 = vsel %vm272, %v264, 0
        %v277 = vsel %vm272, %v265, 0
        %v280 = vsel %vm272, %v266, 0
        %v283 = vsel %vm272, %v267, 0
        %v286 = vsel %vm272, %v268, 0
        %v289 = vsel %vm272, %v269, 0
        %v292 = vsel %vm272, %v270, 0
        %v295 = vsel %vm272, %v271, 0
        %vm297 = vcmask 1040384
        %vm298 = vcmask 1041408
        %v299 = vsel %vm297, 4294967295, 65535
        %v300 = vsel %vm298, %v299, 0
        %v302 = vand.u32 %v231, %v300
        %304 = vmatprep.subr.bf16.mxu0 0
        %305 = vmatpush1.bf16.msra.mxu0 %v302
        %306 = vmatprep.subr.bf16.mxu0 0
        %307 = vmatpush1.bf16.msra.mxu0 0
        %308 = vmatprep.subr.bf16.mxu0 0
        %309 = vmatpush1.bf16.msra.mxu0 0
        %310 = vmatprep.subr.bf16.mxu0 0
        %311 = vmatpush1.bf16.msra.mxu0 0
        %312 = vmatprep.subr.bf16.mxu0 0
        %313 = vmatpush1.bf16.msra.mxu0 0
        %314 = vmatprep.subr.bf16.mxu0 0
        %315 = vmatpush1.bf16.msra.mxu0 0
        %316 = vmatprep.subr.bf16.mxu0 0
        %317 = vmatpush1.bf16.msra.mxu0 0
        %318 = vmatprep.subr.bf16.mxu0 0
        %319 = vmatpush1.bf16.msra.mxu0 0
        %320 = vmatprep.subr.bf16.mxu0 0
        %321 = vmatpush1.bf16.msra.mxu0 0
        %322 = vmatprep.subr.bf16.mxu0 0
        %323 = vmatpush1.bf16.msra.mxu0 0
        %324 = vmatprep.subr.bf16.mxu0 0
        %325 = vmatpush1.bf16.msra.mxu0 0
        %326 = vmatprep.subr.bf16.mxu0 0
        %327 = vmatpush1.bf16.msra.mxu0 0
        %328 = vmatprep.subr.bf16.mxu0 0
        %329 = vmatpush1.bf16.msra.mxu0 0
        %330 = vmatprep.subr.bf16.mxu0 0
        %331 = vmatpush1.bf16.msra.mxu0 0
        %332 = vmatprep.subr.bf16.mxu0 0
        %333 = vmatpush1.bf16.msra.mxu0 0
        %334 = vmatprep.subr.bf16.mxu0 0
        %335 = vmatpush1.bf16.msra.mxu0 0
        %336 = vmatprep.mubr.bf16.mxu0 0
        %337 = vmatmul.mubr.bf16.gmra.mrb[0].mxu0 %v274
        %v338 = vpop.f32.mrb[0].mxu0
        %v339 = vadd.f32 0.0, %v338
        %v340 = vpop.f32.mrb[0].mxu0
        %v341 = vpop.f32.mrb[0].mxu0
        %v342 = vadd.f32 0.0, %v341
        %v343 = vpop.f32.mrb[0].mxu0
        %344 = vmatprep.mubr.bf16.mxu0 0
        %345 = vmatmul.mubr.bf16.gmra.mrb[0].mxu0 %v277
        %v346 = vpop.f32.mrb[0].mxu0
        %v347 = vadd.f32 0.0, %v346
        %v348 = vpop.f32.mrb[0].mxu0
        %v349 = vpop.f32.mrb[0].mxu0
        %v350 = vadd.f32 0.0, %v349
        %v351 = vpop.f32.mrb[0].mxu0
        %352 = vmatprep.mubr.bf16.mxu0 0
        %353 = vmatmul.mubr.bf16.gmra.mrb[0].mxu0 %v280
        %v354 = vpop.f32.mrb[0].mxu0
        %v355 = vadd.f32 0.0, %v354
        %v356 = vpop.f32.mrb[0].mxu0
        %v357 = vpop.f32.mrb[0].mxu0
        %v358 = vadd.f32 0.0, %v357
        %v359 = vpop.f32.mrb[0].mxu0
        %360 = vmatprep.mubr.bf16.mxu0 0
        %361 = vmatmul.mubr.bf16.gmra.mrb[0].mxu0 %v283
        %v362 = vpop.f32.mrb[0].mxu0
        %v363 = vadd.f32 0.0, %v362
        %v364 = vpop.f32.mrb[0].mxu0
        %v365 = vpop.f32.mrb[0].mxu0
        %v366 = vadd.f32 0.0, %v365
        %v367 = vpop.f32.mrb[0].mxu0
        %368 = vmatprep.mubr.bf16.mxu0 0
        %369 = vmatmul.mubr.bf16.gmra.mrb[0].mxu0 %v286
        %v370 = vpop.f32.mrb[0].mxu0
        %v371 = vadd.f32 0.0, %v370
        %v372 = vpop.f32.mrb[0].mxu0
        %v373 = vpop.f32.mrb[0].mxu0
        %v374 = vadd.f32 0.0, %v373
        %v375 = vpop.f32.mrb[0].mxu0
        %376 = vmatprep.mubr.bf16.mxu0 0
        %377 = vmatmul.mubr.bf16.gmra.mrb[0].mxu0 %v289
        %v378 = vpop.f32.mrb[0].mxu0
        %v379 = vadd.f32 0.0, %v378
        %v380 = vpop.f32.mrb[0].mxu0
        %v381 = vpop.f32.mrb[0].mxu0
        %v382 = vadd.f32 0.0, %v381
        %v383 = vpop.f32.mrb[0].mxu0
        %384 = vmatprep.mubr.bf16.mxu0 0
        %385 = vmatmul.mubr.bf16.gmra.mrb[0].mxu0 %v292
        %v386 = vpop.f32.mrb[0].mxu0
        %v387 = vadd.f32 0.0, %v386
        %v388 = vpop.f32.mrb[0].mxu0
        %v389 = vpop.f32.mrb[0].mxu0
        %v390 = vadd.f32 0.0, %v389
        %v391 = vpop.f32.mrb[0].mxu0
        %392 = vmatprep.mubr.bf16.mxu0 0
        %393 = vmatmul.mubr.bf16.gmra.mrb[0].mxu0 %v295
        %v394 = vpop.f32.mrb[0].mxu0
        %v395 = vadd.f32 0.0, %v394
        %v396 = vpop.f32.mrb[0].mxu0
        %v397 = vpop.f32.mrb[0].mxu0
        %v398 = vadd.f32 0.0, %v397
        %v399 = vpop.f32.mrb[0].mxu0
        %400 = vdwg.mxu0
        %v401 = vpack.c.bf16 %v342, %v339
        %v402 = vpack.c.bf16 %v350, %v347
        %v403 = vpack.c.bf16 %v358, %v355
        %v404 = vpack.c.bf16 %v366, %v363
        %v405 = vpack.c.bf16 %v374, %v371
        %v406 = vpack.c.bf16 %v382, %v379
        %v407 = vpack.c.bf16 %v390, %v387
        %v408 = vpack.c.bf16 %v398, %v395
        %v409 = vld [vmem:[%s3] sm:$0x1]
        %v411 = vpack.i.b16 %v409, %v409
        %v413 = vlaneseq
        %v414 = vshrl.u32 %v413, 7
        %v415 = vsub.s32 0, %v414
        %v416 = vrot.slane %v411, %v415
        %v417 = vadd.bf16 %v401, %v416
        %v418 = vadd.bf16 %v402, %v416
        %v419 = vadd.bf16 %v403, %v416
        %v420 = vadd.bf16 %v404, %v416
        %v421 = vadd.bf16 %v405, %v416
        %v422 = vadd.bf16 %v406, %v416
        %v423 = vadd.bf16 %v407, %v416
        %v424 = vadd.bf16 %v408, %v416
        %v425 = vmax.bf16 %v417, 0
        %v426 = vmax.bf16 %v418, 0
        %v427 = vmax.bf16 %v419, 0
        %v428 = vmax.bf16 %v420, 0
        %v429 = vmax.bf16 %v421, 0
        %v430 = vmax.bf16 %v422, 0
        %v431 = vmax.bf16 %v423, 0
        %v432 = vmax.bf16 %v424, 0
        %v433 = vld [vmem:[#allocation2] sm:$0xf]
        %v434 = vld [vmem:[#allocation2 + $0x4] sm:$0xf]
        %v435 = vld [vmem:[#allocation2 + $0x8] sm:$0xf]
        %v436 = vld [vmem:[#allocation2 + $0xc] sm:$0xf]
        %v437 = vld [vmem:[#allocation2 + $0x10] sm:$0xf]
        %v438 = vld [vmem:[#allocation2 + $0x14] sm:$0xf]
        %v439 = vld [vmem:[#allocation2 + $0x18] sm:$0xf]
        %v440 = vld [vmem:[#allocation2 + $0x1c] sm:$0xf]
        %v441 = vld [vmem:[#allocation2 + $0x20] sm:$0xf]
        %v442 = vld [vmem:[#allocation2 + $0x24] sm:$0xf]
        %v443 = vld [vmem:[#allocation2 + $0x28] sm:$0xf]
        %v444 = vld [vmem:[#allocation2 + $0x2c] sm:$0xf]
        %v445 = vld [vmem:[#allocation2 + $0x30] sm:$0xf]
        %v446 = vld [vmem:[#allocation2 + $0x34] sm:$0xf]
        %v447 = vld [vmem:[#allocation2 + $0x38] sm:$0xf]
        %v448 = vld [vmem:[#allocation2 + $0x3c] sm:$0xf]
        %v465 = vunpack.c.l.b16 %v433
        %v466 = vunpack.c.l.b16 %v434
        %v467 = vunpack.c.l.b16 %v435
        %v468 = vunpack.c.l.b16 %v436
        %v469 = vunpack.c.l.b16 %v437
        %v470 = vunpack.c.l.b16 %v438
        %v471 = vunpack.c.l.b16 %v439
        %v472 = vunpack.c.l.b16 %v440
        %v473 = vunpack.c.l.b16 %v441
        %v474 = vunpack.c.l.b16 %v442
        %v475 = vunpack.c.l.b16 %v443
        %v476 = vunpack.c.l.b16 %v444
        %v477 = vunpack.c.l.b16 %v445
        %v478 = vunpack.c.l.b16 %v446
        %v479 = vunpack.c.l.b16 %v447
        %v480 = vunpack.c.l.b16 %v448
        %v481 = vpack.c.b16 %v466, %v465
        %v482 = vpack.c.b16 %v468, %v467
        %v483 = vpack.c.b16 %v470, %v469
        %v484 = vpack.c.b16 %v472, %v471
        %v485 = vpack.c.b16 %v474, %v473
        %v486 = vpack.c.b16 %v476, %v475
        %v487 = vpack.c.b16 %v478, %v477
        %v488 = vpack.c.b16 %v480, %v479
        %497 = vmatprep.subr.bf16.mxu0 0
        %498 = vmatpush1.bf16.msra.mxu0 %v481
        %499 = vmatprep.subr.bf16.mxu0 0
        %500 = vmatpush1.bf16.msra.mxu0 %v482
        %501 = vmatprep.subr.bf16.mxu0 0
        %502 = vmatpush1.bf16.msra.mxu0 %v483
        %503 = vmatprep.subr.bf16.mxu0 0
        %504 = vmatpush1.bf16.msra.mxu0 %v484
        %505 = vmatprep.subr.bf16.mxu0 0
        %506 = vmatpush1.bf16.msra.mxu0 %v485
        %507 = vmatprep.subr.bf16.mxu0 0
        %508 = vmatpush1.bf16.msra.mxu0 %v486
        %509 = vmatprep.subr.bf16.mxu0 0
        %510 = vmatpush1.bf16.msra.mxu0 %v487
        %511 = vmatprep.subr.bf16.mxu0 0
        %512 = vmatpush1.bf16.msra.mxu0 %v488
        %513 = vmatprep.subr.bf16.mxu0 0
        %514 = vmatpush1.bf16.msra.mxu0 0
        %515 = vmatprep.subr.bf16.mxu0 0
        %516 = vmatpush1.bf16.msra.mxu0 0
        %517 = vmatprep.subr.bf16.mxu0 0
        %518 = vmatpush1.bf16.msra.mxu0 0
        %519 = vmatprep.subr.bf16.mxu0 0
        %520 = vmatpush1.bf16.msra.mxu0 0
        %521 = vmatprep.subr.bf16.mxu0 0
        %522 = vmatpush1.bf16.msra.mxu0 0
        %523 = vmatprep.subr.bf16.mxu0 0
        %524 = vmatpush1.bf16.msra.mxu0 0
        %525 = vmatprep.subr.bf16.mxu0 0
        %526 = vmatpush1.bf16.msra.mxu0 0
        %527 = vmatprep.subr.bf16.mxu0 0
        %528 = vmatpush1.bf16.msra.mxu0 0
        %529 = vmatprep.mubr.bf16.mxu0 0
        %530 = vmatmul.mubr.bf16.gmra.mrb[0].mxu0 %v425
        %v531 = vpop.f32.mrb[0].mxu0
        %v532 = vadd.f32 0.0, %v531
        %v533 = vpop.f32.mrb[0].mxu0
        %v534 = vpop.f32.mrb[0].mxu0
        %v535 = vadd.f32 0.0, %v534
        %v536 = vpop.f32.mrb[0].mxu0
        %537 = vmatprep.mubr.bf16.mxu0 0
        %538 = vmatmul.mubr.bf16.gmra.mrb[0].mxu0 %v426
        %v539 = vpop.f32.mrb[0].mxu0
        %v540 = vadd.f32 0.0, %v539
        %v541 = vpop.f32.mrb[0].mxu0
        %v542 = vpop.f32.mrb[0].mxu0
        %v543 = vadd.f32 0.0, %v542
        %v544 = vpop.f32.mrb[0].mxu0
        %545 = vmatprep.mubr.bf16.mxu0 0
        %546 = vmatmul.mubr.bf16.gmra.mrb[0].mxu0 %v427
        %v547 = vpop.f32.mrb[0].mxu0
        %v548 = vadd.f32 0.0, %v547
        %v549 = vpop.f32.mrb[0].mxu0
        %v550 = vpop.f32.mrb[0].mxu0
        %v551 = vadd.f32 0.0, %v550
        %v552 = vpop.f32.mrb[0].mxu0
        %553 = vmatprep.mubr.bf16.mxu0 0
        %554 = vmatmul.mubr.bf16.gmra.mrb[0].mxu0 %v428
        %v555 = vpop.f32.mrb[0].mxu0
        %v556 = vadd.f32 0.0, %v555
        %v557 = vpop.f32.mrb[0].mxu0
        %v558 = vpop.f32.mrb[0].mxu0
        %v559 = vadd.f32 0.0, %v558
        %v560 = vpop.f32.mrb[0].mxu0
        %561 = vmatprep.mubr.bf16.mxu0 0
        %562 = vmatmul.mubr.bf16.gmra.mrb[0].mxu0 %v429
        %v563 = vpop.f32.mrb[0].mxu0
        %v564 = vadd.f32 0.0, %v563
        %v565 = vpop.f32.mrb[0].mxu0
        %v566 = vpop.f32.mrb[0].mxu0
        %v567 = vadd.f32 0.0, %v566
        %v568 = vpop.f32.mrb[0].mxu0
        %569 = vmatprep.mubr.bf16.mxu0 0
        %570 = vmatmul.mubr.bf16.gmra.mrb[0].mxu0 %v430
        %v571 = vpop.f32.mrb[0].mxu0
        %v572 = vadd.f32 0.0, %v571
        %v573 = vpop.f32.mrb[0].mxu0
        %v574 = vpop.f32.mrb[0].mxu0
        %v575 = vadd.f32 0.0, %v574
        %v576 = vpop.f32.mrb[0].mxu0
        %577 = vmatprep.mubr.bf16.mxu0 0
        %578 = vmatmul.mubr.bf16.gmra.mrb[0].mxu0 %v431
        %v579 = vpop.f32.mrb[0].mxu0
        %v580 = vadd.f32 0.0, %v579
        %v581 = vpop.f32.mrb[0].mxu0
        %v582 = vpop.f32.mrb[0].mxu0
        %v583 = vadd.f32 0.0, %v582
        %v584 = vpop.f32.mrb[0].mxu0
        %585 = vmatprep.mubr.bf16.mxu0 0
        %586 = vmatmul.mubr.bf16.gmra.mrb[0].mxu0 %v432
        %v587 = vpop.f32.mrb[0].mxu0
        %v588 = vadd.f32 0.0, %v587
        %v589 = vpop.f32.mrb[0].mxu0
        %v590 = vpop.f32.mrb[0].mxu0
        %v591 = vadd.f32 0.0, %v590
        %v592 = vpop.f32.mrb[0].mxu0
        %593 = vdwg.mxu0
        %v594 = vpack.c.bf16 %v535, %v532
        %v595 = vpack.c.bf16 %v543, %v540
        %v596 = vpack.c.bf16 %v551, %v548
        %v597 = vpack.c.bf16 %v559, %v556
        %v598 = vpack.c.bf16 %v567, %v564
        %v599 = vpack.c.bf16 %v575, %v572
        %v600 = vpack.c.bf16 %v583, %v580
        %v601 = vpack.c.bf16 %v591, %v588
        %v602 = vshrl.u32 %v409, 16
        %v603 = vpack.i.b16 %v602, %v602
        %v605 = vlaneseq
        %v606 = vshrl.u32 %v605, 7
        %v607 = vsub.s32 0, %v606
        %v608 = vrot.slane %v603, %v607
        %v609 = vadd.bf16 %v594, %v608
        %v610 = vadd.bf16 %v595, %v608
        %v611 = vadd.bf16 %v596, %v608
        %v612 = vadd.bf16 %v597, %v608
        %v613 = vadd.bf16 %v598, %v608
        %v614 = vadd.bf16 %v599, %v608
        %v615 = vadd.bf16 %v600, %v608
        %v616 = vadd.bf16 %v601, %v608
        %v617 = vmax.bf16 %v609, 0
        %v618 = vmax.bf16 %v610, 0
        %v619 = vmax.bf16 %v611, 0
        %v620 = vmax.bf16 %v612, 0
        %v621 = vmax.bf16 %v613, 0
        %v622 = vmax.bf16 %v614, 0
        %v623 = vmax.bf16 %v615, 0
        %v624 = vmax.bf16 %v616, 0
        %s625 = scalar_lea.vmem [#allocation2], 64
        %v626 = vld [vmem:[%s625] sm:$0xf]
        %v627 = vld [vmem:[%s625 + $0x4] sm:$0xf]
        %v628 = vld [vmem:[%s625 + $0x8] sm:$0xf]
        %v629 = vld [vmem:[%s625 + $0xc] sm:$0xf]
        %v630 = vld [vmem:[%s625 + $0x10] sm:$0xf]
        %v631 = vld [vmem:[%s625 + $0x14] sm:$0xf]
        %v632 = vld [vmem:[%s625 + $0x18] sm:$0xf]
        %v633 = vld [vmem:[%s625 + $0x1c] sm:$0xf]
        %v634 = vld [vmem:[%s625 + $0x20] sm:$0xf]
        %v635 = vld [vmem:[%s625 + $0x24] sm:$0xf]
        %v636 = vld [vmem:[%s625 + $0x28] sm:$0xf]
        %v637 = vld [vmem:[%s625 + $0x2c] sm:$0xf]
        %v638 = vld [vmem:[%s625 + $0x30] sm:$0xf]
        %v639 = vld [vmem:[%s625 + $0x34] sm:$0xf]
        %v640 = vld [vmem:[%s625 + $0x38] sm:$0xf]
        %v641 = vld [vmem:[%s625 + $0x3c] sm:$0xf]
        %v658 = vunpack.c.l.b16 %v626
        %v659 = vunpack.c.l.b16 %v627
        %v660 = vunpack.c.l.b16 %v628
        %v661 = vunpack.c.l.b16 %v629
        %v662 = vunpack.c.l.b16 %v630
        %v663 = vunpack.c.l.b16 %v631
        %v664 = vunpack.c.l.b16 %v632
        %v665 = vunpack.c.l.b16 %v633
        %v666 = vunpack.c.l.b16 %v634
        %v667 = vunpack.c.l.b16 %v635
        %v668 = vunpack.c.l.b16 %v636
        %v669 = vunpack.c.l.b16 %v637
        %v670 = vunpack.c.l.b16 %v638
        %v671 = vunpack.c.l.b16 %v639
        %v672 = vunpack.c.l.b16 %v640
        %v673 = vunpack.c.l.b16 %v641
        %v674 = vpack.c.b16 %v659, %v658
        %v675 = vpack.c.b16 %v661, %v660
        %v676 = vpack.c.b16 %v663, %v662
        %v677 = vpack.c.b16 %v665, %v664
        %v678 = vpack.c.b16 %v667, %v666
        %v679 = vpack.c.b16 %v669, %v668
        %v680 = vpack.c.b16 %v671, %v670
        %v681 = vpack.c.b16 %v673, %v672
        %690 = vmatprep.subr.bf16.mxu0 0
        %691 = vmatpush1.bf16.msra.mxu0 %v674
        %692 = vmatprep.subr.bf16.mxu0 0
        %693 = vmatpush1.bf16.msra.mxu0 %v675
        %694 = vmatprep.subr.bf16.mxu0 0
        %695 = vmatpush1.bf16.msra.mxu0 %v676
        %696 = vmatprep.subr.bf16.mxu0 0
        %697 = vmatpush1.bf16.msra.mxu0 %v677
        %698 = vmatprep.subr.bf16.mxu0 0
        %699 = vmatpush1.bf16.msra.mxu0 %v678
        %700 = vmatprep.subr.bf16.mxu0 0
        %701 = vmatpush1.bf16.msra.mxu0 %v679
        %702 = vmatprep.subr.bf16.mxu0 0
        %703 = vmatpush1.bf16.msra.mxu0 %v680
        %704 = vmatprep.subr.bf16.mxu0 0
        %705 = vmatpush1.bf16.msra.mxu0 %v681
        %706 = vmatprep.subr.bf16.mxu0 0
        %707 = vmatpush1.bf16.msra.mxu0 0
        %708 = vmatprep.subr.bf16.mxu0 0
        %709 = vmatpush1.bf16.msra.mxu0 0
        %710 = vmatprep.subr.bf16.mxu0 0
        %711 = vmatpush1.bf16.msra.mxu0 0
        %712 = vmatprep.subr.bf16.mxu0 0
        %713 = vmatpush1.bf16.msra.mxu0 0
        %714 = vmatprep.subr.bf16.mxu0 0
        %715 = vmatpush1.bf16.msra.mxu0 0
        %716 = vmatprep.subr.bf16.mxu0 0
        %717 = vmatpush1.bf16.msra.mxu0 0
        %718 = vmatprep.subr.bf16.mxu0 0
        %719 = vmatpush1.bf16.msra.mxu0 0
        %720 = vmatprep.subr.bf16.mxu0 0
        %721 = vmatpush1.bf16.msra.mxu0 0
        %722 = vmatprep.mubr.bf16.mxu0 0
        %723 = vmatmul.mubr.bf16.gmra.mrb[0].mxu0 %v617
        %v724 = vpop.f32.mrb[0].mxu0
        %v725 = vadd.f32 0.0, %v724
        %v726 = vpop.f32.mrb[0].mxu0
        %v727 = vpop.f32.mrb[0].mxu0
        %v728 = vadd.f32 0.0, %v727
        %v729 = vpop.f32.mrb[0].mxu0
        %730 = vmatprep.mubr.bf16.mxu0 0
        %731 = vmatmul.mubr.bf16.gmra.mrb[0].mxu0 %v618
        %v732 = vpop.f32.mrb[0].mxu0
        %v733 = vadd.f32 0.0, %v732
        %v734 = vpop.f32.mrb[0].mxu0
        %v735 = vpop.f32.mrb[0].mxu0
        %v736 = vadd.f32 0.0, %v735
        %v737 = vpop.f32.mrb[0].mxu0
        %738 = vmatprep.mubr.bf16.mxu0 0
        %739 = vmatmul.mubr.bf16.gmra.mrb[0].mxu0 %v619
        %v740 = vpop.f32.mrb[0].mxu0
        %v741 = vadd.f32 0.0, %v740
        %v742 = vpop.f32.mrb[0].mxu0
        %v743 = vpop.f32.mrb[0].mxu0
        %v744 = vadd.f32 0.0, %v743
        %v745 = vpop.f32.mrb[0].mxu0
        %746 = vmatprep.mubr.bf16.mxu0 0
        %747 = vmatmul.mubr.bf16.gmra.mrb[0].mxu0 %v620
        %v748 = vpop.f32.mrb[0].mxu0
        %v749 = vadd.f32 0.0, %v748
        %v750 = vpop.f32.mrb[0].mxu0
        %v751 = vpop.f32.mrb[0].mxu0
        %v752 = vadd.f32 0.0, %v751
        %v753 = vpop.f32.mrb[0].mxu0
        %754 = vmatprep.mubr.bf16.mxu0 0
        %755 = vmatmul.mubr.bf16.gmra.mrb[0].mxu0 %v621
        %v756 = vpop.f32.mrb[0].mxu0
        %v757 = vadd.f32 0.0, %v756
        %v758 = vpop.f32.mrb[0].mxu0
        %v759 = vpop.f32.mrb[0].mxu0
        %v760 = vadd.f32 0.0, %v759
        %v761 = vpop.f32.mrb[0].mxu0
        %762 = vmatprep.mubr.bf16.mxu0 0
        %763 = vmatmul.mubr.bf16.gmra.mrb[0].mxu0 %v622
        %v764 = vpop.f32.mrb[0].mxu0
        %v765 = vadd.f32 0.0, %v764
        %v766 = vpop.f32.mrb[0].mxu0
        %v767 = vpop.f32.mrb[0].mxu0
        %v768 = vadd.f32 0.0, %v767
        %v769 = vpop.f32.mrb[0].mxu0
        %770 = vmatprep.mubr.bf16.mxu0 0
        %771 = vmatmul.mubr.bf16.gmra.mrb[0].mxu0 %v623
        %v772 = vpop.f32.mrb[0].mxu0
        %v773 = vadd.f32 0.0, %v772
        %v774 = vpop.f32.mrb[0].mxu0
        %v775 = vpop.f32.mrb[0].mxu0
        %v776 = vadd.f32 0.0, %v775
        %v777 = vpop.f32.mrb[0].mxu0
        %778 = vmatprep.mubr.bf16.mxu0 0
        %779 = vmatmul.mubr.bf16.gmra.mrb[0].mxu0 %v624
        %v780 = vpop.f32.mrb[0].mxu0
        %v781 = vadd.f32 0.0, %v780
        %v782 = vpop.f32.mrb[0].mxu0
        %v783 = vpop.f32.mrb[0].mxu0
        %v784 = vadd.f32 0.0, %v783
        %v785 = vpop.f32.mrb[0].mxu0
        %786 = vdwg.mxu0
        %v787 = vpack.c.bf16 %v728, %v725
        %v788 = vpack.c.bf16 %v736, %v733
        %v789 = vpack.c.bf16 %v744, %v741
        %v790 = vpack.c.bf16 %v752, %v749
        %v791 = vpack.c.bf16 %v760, %v757
        %v792 = vpack.c.bf16 %v768, %v765
        %v793 = vpack.c.bf16 %v776, %v773
        %v794 = vpack.c.bf16 %v784, %v781
        %v795 = vld [vmem:[%s3] sm:$0x2]
        %v797 = vpack.i.b16 %v795, %v795
        %v799 = vlaneseq
        %v800 = vshrl.u32 %v799, 7
        %v801 = vsub.s32 1, %v800
        %v802 = vrot.slane %v797, %v801
        %v803 = vadd.bf16 %v787, %v802
        %v804 = vadd.bf16 %v788, %v802
        %v805 = vadd.bf16 %v789, %v802
        %v806 = vadd.bf16 %v790, %v802
        %v807 = vadd.bf16 %v791, %v802
        %v808 = vadd.bf16 %v792, %v802
        %v809 = vadd.bf16 %v793, %v802
        %v810 = vadd.bf16 %v794, %v802
        %v811 = vmax.bf16 %v803, 0
        %v812 = vmax.bf16 %v804, 0
        %v813 = vmax.bf16 %v805, 0
        %v814 = vmax.bf16 %v806, 0
        %v815 = vmax.bf16 %v807, 0
        %v816 = vmax.bf16 %v808, 0
        %v817 = vmax.bf16 %v809, 0
        %v818 = vmax.bf16 %v810, 0
        %s819 = scalar_lea.vmem [#allocation2], 128
        %v820 = vld [vmem:[%s819] sm:$0xf]
        %v821 = vld [vmem:[%s819 + $0x4] sm:$0xf]
        %v822 = vld [vmem:[%s819 + $0x8] sm:$0xf]
        %v823 = vld [vmem:[%s819 + $0xc] sm:$0xf]
        %v824 = vld [vmem:[%s819 + $0x10] sm:$0xf]
        %v825 = vld [vmem:[%s819 + $0x14] sm:$0xf]
        %v826 = vld [vmem:[%s819 + $0x18] sm:$0xf]
        %v827 = vld [vmem:[%s819 + $0x1c] sm:$0xf]
        %v828 = vld [vmem:[%s819 + $0x20] sm:$0xf]
        %v829 = vld [vmem:[%s819 + $0x24] sm:$0xf]
        %v830 = vld [vmem:[%s819 + $0x28] sm:$0xf]
        %v831 = vld [vmem:[%s819 + $0x2c] sm:$0xf]
        %v832 = vld [vmem:[%s819 + $0x30] sm:$0xf]
        %v833 = vld [vmem:[%s819 + $0x34] sm:$0xf]
        %v834 = vld [vmem:[%s819 + $0x38] sm:$0xf]
        %v835 = vld [vmem:[%s819 + $0x3c] sm:$0xf]
        %v852 = vunpack.c.l.b16 %v820
        %v853 = vunpack.c.l.b16 %v821
        %v854 = vunpack.c.l.b16 %v822
        %v855 = vunpack.c.l.b16 %v823
        %v856 = vunpack.c.l.b16 %v824
        %v857 = vunpack.c.l.b16 %v825
        %v858 = vunpack.c.l.b16 %v826
        %v859 = vunpack.c.l.b16 %v827
        %v860 = vunpack.c.l.b16 %v828
        %v861 = vunpack.c.l.b16 %v829
        %v862 = vunpack.c.l.b16 %v830
        %v863 = vunpack.c.l.b16 %v831
        %v864 = vunpack.c.l.b16 %v832
        %v865 = vunpack.c.l.b16 %v833
        %v866 = vunpack.c.l.b16 %v834
        %v867 = vunpack.c.l.b16 %v835
        %v868 = vpack.c.b16 %v853, %v852
        %v869 = vpack.c.b16 %v855, %v854
        %v870 = vpack.c.b16 %v857, %v856
        %v871 = vpack.c.b16 %v859, %v858
        %v872 = vpack.c.b16 %v861, %v860
        %v873 = vpack.c.b16 %v863, %v862
        %v874 = vpack.c.b16 %v865, %v864
        %v875 = vpack.c.b16 %v867, %v866
        %884 = vmatprep.subr.bf16.mxu0 0
        %885 = vmatpush1.bf16.msra.mxu0 %v868
        %886 = vmatprep.subr.bf16.mxu0 0
        %887 = vmatpush1.bf16.msra.mxu0 %v869
        %888 = vmatprep.subr.bf16.mxu0 0
        %889 = vmatpush1.bf16.msra.mxu0 %v870
        %890 = vmatprep.subr.bf16.mxu0 0
        %891 = vmatpush1.bf16.msra.mxu0 %v871
        %892 = vmatprep.subr.bf16.mxu0 0
        %893 = vmatpush1.bf16.msra.mxu0 %v872
        %894 = vmatprep.subr.bf16.mxu0 0
        %895 = vmatpush1.bf16.msra.mxu0 %v873
        %896 = vmatprep.subr.bf16.mxu0 0
        %897 = vmatpush1.bf16.msra.mxu0 %v874
        %898 = vmatprep.subr.bf16.mxu0 0
        %899 = vmatpush1.bf16.msra.mxu0 %v875
        %900 = vmatprep.subr.bf16.mxu0 0
        %901 = vmatpush1.bf16.msra.mxu0 0
        %902 = vmatprep.subr.bf16.mxu0 0
        %903 = vmatpush1.bf16.msra.mxu0 0
        %904 = vmatprep.subr.bf16.mxu0 0
        %905 = vmatpush1.bf16.msra.mxu0 0
        %906 = vmatprep.subr.bf16.mxu0 0
        %907 = vmatpush1.bf16.msra.mxu0 0
        %908 = vmatprep.subr.bf16.mxu0 0
        %909 = vmatpush1.bf16.msra.mxu0 0
        %910 = vmatprep.subr.bf16.mxu0 0
        %911 = vmatpush1.bf16.msra.mxu0 0
        %912 = vmatprep.subr.bf16.mxu0 0
        %913 = vmatpush1.bf16.msra.mxu0 0
        %914 = vmatprep.subr.bf16.mxu0 0
        %915 = vmatpush1.bf16.msra.mxu0 0
        %916 = vmatprep.mubr.bf16.mxu0 0
        %917 = vmatmul.mubr.bf16.gmra.mrb[0].mxu0 %v811
        %v918 = vpop.f32.mrb[0].mxu0
        %v919 = vadd.f32 0.0, %v918
        %v920 = vpop.f32.mrb[0].mxu0
        %v921 = vpop.f32.mrb[0].mxu0
        %v922 = vadd.f32 0.0, %v921
        %v923 = vpop.f32.mrb[0].mxu0
        %924 = vmatprep.mubr.bf16.mxu0 0
        %925 = vmatmul.mubr.bf16.gmra.mrb[0].mxu0 %v812
        %v926 = vpop.f32.mrb[0].mxu0
        %v927 = vadd.f32 0.0, %v926
        %v928 = vpop.f32.mrb[0].mxu0
        %v929 = vpop.f32.mrb[0].mxu0
        %v930 = vadd.f32 0.0, %v929
        %v931 = vpop.f32.mrb[0].mxu0
        %932 = vmatprep.mubr.bf16.mxu0 0
        %933 = vmatmul.mubr.bf16.gmra.mrb[0].mxu0 %v813
        %v934 = vpop.f32.mrb[0].mxu0
        %v935 = vadd.f32 0.0, %v934
        %v936 = vpop.f32.mrb[0].mxu0
        %v937 = vpop.f32.mrb[0].mxu0
        %v938 = vadd.f32 0.0, %v937
        %v939 = vpop.f32.mrb[0].mxu0
        %940 = vmatprep.mubr.bf16.mxu0 0
        %941 = vmatmul.mubr.bf16.gmra.mrb[0].mxu0 %v814
        %v942 = vpop.f32.mrb[0].mxu0
        %v943 = vadd.f32 0.0, %v942
        %v944 = vpop.f32.mrb[0].mxu0
        %v945 = vpop.f32.mrb[0].mxu0
        %v946 = vadd.f32 0.0, %v945
        %v947 = vpop.f32.mrb[0].mxu0
        %948 = vmatprep.mubr.bf16.mxu0 0
        %949 = vmatmul.mubr.bf16.gmra.mrb[0].mxu0 %v815
        %v950 = vpop.f32.mrb[0].mxu0
        %v951 = vadd.f32 0.0, %v950
        %v952 = vpop.f32.mrb[0].mxu0
        %v953 = vpop.f32.mrb[0].mxu0
        %v954 = vadd.f32 0.0, %v953
        %v955 = vpop.f32.mrb[0].mxu0
        %956 = vmatprep.mubr.bf16.mxu0 0
        %957 = vmatmul.mubr.bf16.gmra.mrb[0].mxu0 %v816
        %v958 = vpop.f32.mrb[0].mxu0
        %v959 = vadd.f32 0.0, %v958
        %v960 = vpop.f32.mrb[0].mxu0
        %v961 = vpop.f32.mrb[0].mxu0
        %v962 = vadd.f32 0.0, %v961
        %v963 = vpop.f32.mrb[0].mxu0
        %964 = vmatprep.mubr.bf16.mxu0 0
        %965 = vmatmul.mubr.bf16.gmra.mrb[0].mxu0 %v817
        %v966 = vpop.f32.mrb[0].mxu0
        %v967 = vadd.f32 0.0, %v966
        %v968 = vpop.f32.mrb[0].mxu0
        %v969 = vpop.f32.mrb[0].mxu0
        %v970 = vadd.f32 0.0, %v969
        %v971 = vpop.f32.mrb[0].mxu0
        %972 = vmatprep.mubr.bf16.mxu0 0
        %973 = vmatmul.mubr.bf16.gmra.mrb[0].mxu0 %v818
        %v974 = vpop.f32.mrb[0].mxu0
        %v975 = vadd.f32 0.0, %v974
        %v976 = vpop.f32.mrb[0].mxu0
        %v977 = vpop.f32.mrb[0].mxu0
        %v978 = vadd.f32 0.0, %v977
        %v979 = vpop.f32.mrb[0].mxu0
        %980 = vdwg.mxu0
        %v981 = vpack.c.bf16 %v922, %v919
        %v982 = vpack.c.bf16 %v930, %v927
        %v983 = vpack.c.bf16 %v938, %v935
        %v984 = vpack.c.bf16 %v946, %v943
        %v985 = vpack.c.bf16 %v954, %v951
        %v986 = vpack.c.bf16 %v962, %v959
        %v987 = vpack.c.bf16 %v970, %v967
        %v988 = vpack.c.bf16 %v978, %v975
        %v989 = vshrl.u32 %v795, 16
        %v990 = vpack.i.b16 %v989, %v989
        %v992 = vlaneseq
        %v993 = vshrl.u32 %v992, 7
        %v994 = vsub.s32 1, %v993
        %v995 = vrot.slane %v990, %v994
        %v996 = vadd.bf16 %v981, %v995
        %v997 = vadd.bf16 %v982, %v995
        %v998 = vadd.bf16 %v983, %v995
        %v999 = vadd.bf16 %v984, %v995
        %v1000 = vadd.bf16 %v985, %v995
        %v1001 = vadd.bf16 %v986, %v995
        %v1002 = vadd.bf16 %v987, %v995
        %v1003 = vadd.bf16 %v988, %v995
        %v1004 = vmax.bf16 %v996, 0
        %v1005 = vmax.bf16 %v997, 0
        %v1006 = vmax.bf16 %v998, 0
        %v1007 = vmax.bf16 %v999, 0
        %v1008 = vmax.bf16 %v1000, 0
        %v1009 = vmax.bf16 %v1001, 0
        %v1010 = vmax.bf16 %v1002, 0
        %v1011 = vmax.bf16 %v1003, 0
        %s1012 = scalar_lea.vmem [#allocation2], 192
        %v1013 = vld [vmem:[%s1012] sm:$0xf]
        %v1014 = vld [vmem:[%s1012 + $0x4] sm:$0xf]
        %v1015 = vld [vmem:[%s1012 + $0x8] sm:$0xf]
        %v1016 = vld [vmem:[%s1012 + $0xc] sm:$0xf]
        %v1017 = vld [vmem:[%s1012 + $0x10] sm:$0xf]
        %v1018 = vld [vmem:[%s1012 + $0x14] sm:$0xf]
        %v1019 = vld [vmem:[%s1012 + $0x18] sm:$0xf]
        %v1020 = vld [vmem:[%s1012 + $0x1c] sm:$0xf]
        %v1021 = vld [vmem:[%s1012 + $0x20] sm:$0xf]
        %v1022 = vld [vmem:[%s1012 + $0x24] sm:$0xf]
        %v1023 = vld [vmem:[%s1012 + $0x28] sm:$0xf]
        %v1024 = vld [vmem:[%s1012 + $0x2c] sm:$0xf]
        %v1025 = vld [vmem:[%s1012 + $0x30] sm:$0xf]
        %v1026 = vld [vmem:[%s1012 + $0x34] sm:$0xf]
        %v1027 = vld [vmem:[%s1012 + $0x38] sm:$0xf]
        %v1028 = vld [vmem:[%s1012 + $0x3c] sm:$0xf]
        %v1045 = vunpack.c.l.b16 %v1013
        %v1046 = vunpack.c.l.b16 %v1014
        %v1047 = vunpack.c.l.b16 %v1015
        %v1048 = vunpack.c.l.b16 %v1016
        %v1049 = vunpack.c.l.b16 %v1017
        %v1050 = vunpack.c.l.b16 %v1018
        %v1051 = vunpack.c.l.b16 %v1019
        %v1052 = vunpack.c.l.b16 %v1020
        %v1053 = vunpack.c.l.b16 %v1021
        %v1054 = vunpack.c.l.b16 %v1022
        %v1055 = vunpack.c.l.b16 %v1023
        %v1056 = vunpack.c.l.b16 %v1024
        %v1057 = vunpack.c.l.b16 %v1025
        %v1058 = vunpack.c.l.b16 %v1026
        %v1059 = vunpack.c.l.b16 %v1027
        %v1060 = vunpack.c.l.b16 %v1028
        %v1061 = vpack.c.b16 %v1046, %v1045
        %v1062 = vpack.c.b16 %v1048, %v1047
        %v1063 = vpack.c.b16 %v1050, %v1049
        %v1064 = vpack.c.b16 %v1052, %v1051
        %v1065 = vpack.c.b16 %v1054, %v1053
        %v1066 = vpack.c.b16 %v1056, %v1055
        %v1067 = vpack.c.b16 %v1058, %v1057
        %v1068 = vpack.c.b16 %v1060, %v1059
        %1077 = vmatprep.subr.bf16.mxu0 0
        %1078 = vmatpush1.bf16.msra.mxu0 %v1061
        %1079 = vmatprep.subr.bf16.mxu0 0
        %1080 = vmatpush1.bf16.msra.mxu0 %v1062
        %1081 = vmatprep.subr.bf16.mxu0 0
        %1082 = vmatpush1.bf16.msra.mxu0 %v1063
        %1083 = vmatprep.subr.bf16.mxu0 0
        %1084 = vmatpush1.bf16.msra.mxu0 %v1064
        %1085 = vmatprep.subr.bf16.mxu0 0
        %1086 = vmatpush1.bf16.msra.mxu0 %v1065
        %1087 = vmatprep.subr.bf16.mxu0 0
        %1088 = vmatpush1.bf16.msra.mxu0 %v1066
        %1089 = vmatprep.subr.bf16.mxu0 0
        %1090 = vmatpush1.bf16.msra.mxu0 %v1067
        %1091 = vmatprep.subr.bf16.mxu0 0
        %1092 = vmatpush1.bf16.msra.mxu0 %v1068
        %1093 = vmatprep.subr.bf16.mxu0 0
        %1094 = vmatpush1.bf16.msra.mxu0 0
        %1095 = vmatprep.subr.bf16.mxu0 0
        %1096 = vmatpush1.bf16.msra.mxu0 0
        %1097 = vmatprep.subr.bf16.mxu0 0
        %1098 = vmatpush1.bf16.msra.mxu0 0
        %1099 = vmatprep.subr.bf16.mxu0 0
        %1100 = vmatpush1.bf16.msra.mxu0 0
        %1101 = vmatprep.subr.bf16.mxu0 0
        %1102 = vmatpush1.bf16.msra.mxu0 0
        %1103 = vmatprep.subr.bf16.mxu0 0
        %1104 = vmatpush1.bf16.msra.mxu0 0
        %1105 = vmatprep.subr.bf16.mxu0 0
        %1106 = vmatpush1.bf16.msra.mxu0 0
        %1107 = vmatprep.subr.bf16.mxu0 0
        %1108 = vmatpush1.bf16.msra.mxu0 0
        %1109 = vmatprep.mubr.bf16.mxu0 0
        %1110 = vmatmul.mubr.bf16.gmra.mrb[0].mxu0 %v1004
        %v1111 = vpop.f32.mrb[0].mxu0
        %v1112 = vadd.f32 0.0, %v1111
        %v1113 = vpop.f32.mrb[0].mxu0
        %v1114 = vpop.f32.mrb[0].mxu0
        %v1115 = vadd.f32 0.0, %v1114
        %v1116 = vpop.f32.mrb[0].mxu0
        %1117 = vmatprep.mubr.bf16.mxu0 0
        %1118 = vmatmul.mubr.bf16.gmra.mrb[0].mxu0 %v1005
        %v1119 = vpop.f32.mrb[0].mxu0
        %v1120 = vadd.f32 0.0, %v1119
        %v1121 = vpop.f32.mrb[0].mxu0
        %v1122 = vpop.f32.mrb[0].mxu0
        %v1123 = vadd.f32 0.0, %v1122
        %v1124 = vpop.f32.mrb[0].mxu0
        %1125 = vmatprep.mubr.bf16.mxu0 0
        %1126 = vmatmul.mubr.bf16.gmra.mrb[0].mxu0 %v1006
        %v1127 = vpop.f32.mrb[0].mxu0
        %v1128 = vadd.f32 0.0, %v1127
        %v1129 = vpop.f32.mrb[0].mxu0
        %v1130 = vpop.f32.mrb[0].mxu0
        %v1131 = vadd.f32 0.0, %v1130
        %v1132 = vpop.f32.mrb[0].mxu0
        %1133 = vmatprep.mubr.bf16.mxu0 0
        %1134 = vmatmul.mubr.bf16.gmra.mrb[0].mxu0 %v1007
        %v1135 = vpop.f32.mrb[0].mxu0
        %v1136 = vadd.f32 0.0, %v1135
        %v1137 = vpop.f32.mrb[0].mxu0
        %v1138 = vpop.f32.mrb[0].mxu0
        %v1139 = vadd.f32 0.0, %v1138
        %v1140 = vpop.f32.mrb[0].mxu0
        %1141 = vmatprep.mubr.bf16.mxu0 0
        %1142 = vmatmul.mubr.bf16.gmra.mrb[0].mxu0 %v1008
        %v1143 = vpop.f32.mrb[0].mxu0
        %v1144 = vadd.f32 0.0, %v1143
        %v1145 = vpop.f32.mrb[0].mxu0
        %v1146 = vpop.f32.mrb[0].mxu0
        %v1147 = vadd.f32 0.0, %v1146
        %v1148 = vpop.f32.mrb[0].mxu0
        %1149 = vmatprep.mubr.bf16.mxu0 0
        %1150 = vmatmul.mubr.bf16.gmra.mrb[0].mxu0 %v1009
        %v1151 = vpop.f32.mrb[0].mxu0
        %v1152 = vadd.f32 0.0, %v1151
        %v1153 = vpop.f32.mrb[0].mxu0
        %v1154 = vpop.f32.mrb[0].mxu0
        %v1155 = vadd.f32 0.0, %v1154
        %v1156 = vpop.f32.mrb[0].mxu0
        %1157 = vmatprep.mubr.bf16.mxu0 0
        %1158 = vmatmul.mubr.bf16.gmra.mrb[0].mxu0 %v1010
        %v1159 = vpop.f32.mrb[0].mxu0
        %v1160 = vadd.f32 0.0, %v1159
        %v1161 = vpop.f32.mrb[0].mxu0
        %v1162 = vpop.f32.mrb[0].mxu0
        %v1163 = vadd.f32 0.0, %v1162
        %v1164 = vpop.f32.mrb[0].mxu0
        %1165 = vmatprep.mubr.bf16.mxu0 0
        %1166 = vmatmul.mubr.bf16.gmra.mrb[0].mxu0 %v1011
        %v1167 = vpop.f32.mrb[0].mxu0
        %v1168 = vadd.f32 0.0, %v1167
        %v1169 = vpop.f32.mrb[0].mxu0
        %v1170 = vpop.f32.mrb[0].mxu0
        %v1171 = vadd.f32 0.0, %v1170
        %v1172 = vpop.f32.mrb[0].mxu0
        %1173 = vdwg.mxu0
        %v1174 = vpack.c.bf16 %v1115, %v1112
        %v1175 = vpack.c.bf16 %v1123, %v1120
        %v1176 = vpack.c.bf16 %v1131, %v1128
        %v1177 = vpack.c.bf16 %v1139, %v1136
        %v1178 = vpack.c.bf16 %v1147, %v1144
        %v1179 = vpack.c.bf16 %v1155, %v1152
        %v1180 = vpack.c.bf16 %v1163, %v1160
        %v1181 = vpack.c.bf16 %v1171, %v1168
        %v1182 = vld [vmem:[%s3] sm:$0x4]
        %v1184 = vpack.i.b16 %v1182, %v1182
        %v1186 = vlaneseq
        %v1187 = vshrl.u32 %v1186, 7
        %v1188 = vsub.s32 2, %v1187
        %v1189 = vrot.slane %v1184, %v1188
        %v1190 = vadd.bf16 %v1174, %v1189
        %v1191 = vadd.bf16 %v1175, %v1189
        %v1192 = vadd.bf16 %v1176, %v1189
        %v1193 = vadd.bf16 %v1177, %v1189
        %v1194 = vadd.bf16 %v1178, %v1189
        %v1195 = vadd.bf16 %v1179, %v1189
        %v1196 = vadd.bf16 %v1180, %v1189
        %v1197 = vadd.bf16 %v1181, %v1189
        %v1198 = vmax.bf16 %v1190, 0
        %v1199 = vmax.bf16 %v1191, 0
        %v1200 = vmax.bf16 %v1192, 0
        %v1201 = vmax.bf16 %v1193, 0
        %v1202 = vmax.bf16 %v1194, 0
        %v1203 = vmax.bf16 %v1195, 0
        %v1204 = vmax.bf16 %v1196, 0
        %v1205 = vmax.bf16 %v1197, 0
        %v1206 = vadd.bf16 %v811, %v1198
        %v1207 = vadd.bf16 %v812, %v1199
        %v1208 = vadd.bf16 %v813, %v1200
        %v1209 = vadd.bf16 %v814, %v1201
        %v1210 = vadd.bf16 %v815, %v1202
        %v1211 = vadd.bf16 %v816, %v1203
        %v1212 = vadd.bf16 %v817, %v1204
        %v1213 = vadd.bf16 %v818, %v1205
        %s1214 = scalar_lea.vmem [#allocation2], 256
        %v1215 = vld [vmem:[%s1214] sm:$0xf]
        %v1216 = vld [vmem:[%s1214 + $0x4] sm:$0xf]
        %v1217 = vld [vmem:[%s1214 + $0x8] sm:$0xf]
        %v1218 = vld [vmem:[%s1214 + $0xc] sm:$0xf]
        %v1219 = vld [vmem:[%s1214 + $0x10] sm:$0xf]
        %v1220 = vld [vmem:[%s1214 + $0x14] sm:$0xf]
        %v1221 = vld [vmem:[%s1214 + $0x18] sm:$0xf]
        %v1222 = vld [vmem:[%s1214 + $0x1c] sm:$0xf]
        %v1223 = vld [vmem:[%s1214 + $0x20] sm:$0xf]
        %v1224 = vld [vmem:[%s1214 + $0x24] sm:$0xf]
        %v1225 = vld [vmem:[%s1214 + $0x28] sm:$0xf]
        %v1226 = vld [vmem:[%s1214 + $0x2c] sm:$0xf]
        %v1227 = vld [vmem:[%s1214 + $0x30] sm:$0xf]
        %v1228 = vld [vmem:[%s1214 + $0x34] sm:$0xf]
        %v1229 = vld [vmem:[%s1214 + $0x38] sm:$0xf]
        %v1230 = vld [vmem:[%s1214 + $0x3c] sm:$0xf]
        %v1247 = vunpack.c.l.b16 %v1215
        %v1248 = vunpack.c.l.b16 %v1216
        %v1249 = vunpack.c.l.b16 %v1217
        %v1250 = vunpack.c.l.b16 %v1218
        %v1251 = vunpack.c.l.b16 %v1219
        %v1252 = vunpack.c.l.b16 %v1220
        %v1253 = vunpack.c.l.b16 %v1221
        %v1254 = vunpack.c.l.b16 %v1222
        %v1255 = vunpack.c.l.b16 %v1223
        %v1256 = vunpack.c.l.b16 %v1224
        %v1257 = vunpack.c.l.b16 %v1225
        %v1258 = vunpack.c.l.b16 %v1226
        %v1259 = vunpack.c.l.b16 %v1227
        %v1260 = vunpack.c.l.b16 %v1228
        %v1261 = vunpack.c.l.b16 %v1229
        %v1262 = vunpack.c.l.b16 %v1230
        %v1263 = vpack.c.b16 %v1248, %v1247
        %v1264 = vpack.c.b16 %v1250, %v1249
        %v1265 = vpack.c.b16 %v1252, %v1251
        %v1266 = vpack.c.b16 %v1254, %v1253
        %v1267 = vpack.c.b16 %v1256, %v1255
        %v1268 = vpack.c.b16 %v1258, %v1257
        %v1269 = vpack.c.b16 %v1260, %v1259
        %v1270 = vpack.c.b16 %v1262, %v1261
        %1279 = vmatprep.subr.bf16.mxu0 0
        %1280 = vmatpush1.bf16.msra.mxu0 %v1263
        %1281 = vmatprep.subr.bf16.mxu0 0
        %1282 = vmatpush1.bf16.msra.mxu0 %v1264
        %1283 = vmatprep.subr.bf16.mxu0 0
        %1284 = vmatpush1.bf16.msra.mxu0 %v1265
        %1285 = vmatprep.subr.bf16.mxu0 0
        %1286 = vmatpush1.bf16.msra.mxu0 %v1266
        %1287 = vmatprep.subr.bf16.mxu0 0
        %1288 = vmatpush1.bf16.msra.mxu0 %v1267
        %1289 = vmatprep.subr.bf16.mxu0 0
        %1290 = vmatpush1.bf16.msra.mxu0 %v1268
        %1291 = vmatprep.subr.bf16.mxu0 0
        %1292 = vmatpush1.bf16.msra.mxu0 %v1269
        %1293 = vmatprep.subr.bf16.mxu0 0
        %1294 = vmatpush1.bf16.msra.mxu0 %v1270
        %1295 = vmatprep.subr.bf16.mxu0 0
        %1296 = vmatpush1.bf16.msra.mxu0 0
        %1297 = vmatprep.subr.bf16.mxu0 0
        %1298 = vmatpush1.bf16.msra.mxu0 0
        %1299 = vmatprep.subr.bf16.mxu0 0
        %1300 = vmatpush1.bf16.msra.mxu0 0
        %1301 = vmatprep.subr.bf16.mxu0 0
        %1302 = vmatpush1.bf16.msra.mxu0 0
        %1303 = vmatprep.subr.bf16.mxu0 0
        %1304 = vmatpush1.bf16.msra.mxu0 0
        %1305 = vmatprep.subr.bf16.mxu0 0
        %1306 = vmatpush1.bf16.msra.mxu0 0
        %1307 = vmatprep.subr.bf16.mxu0 0
        %1308 = vmatpush1.bf16.msra.mxu0 0
        %1309 = vmatprep.subr.bf16.mxu0 0
        %1310 = vmatpush1.bf16.msra.mxu0 0
        %1311 = vmatprep.mubr.bf16.mxu0 0
        %1312 = vmatmul.mubr.bf16.gmra.mrb[0].mxu0 %v1206
        %v1313 = vpop.f32.mrb[0].mxu0
        %v1314 = vadd.f32 0.0, %v1313
        %v1315 = vpop.f32.mrb[0].mxu0
        %v1316 = vpop.f32.mrb[0].mxu0
        %v1317 = vadd.f32 0.0, %v1316
        %v1318 = vpop.f32.mrb[0].mxu0
        %1319 = vmatprep.mubr.bf16.mxu0 0
        %1320 = vmatmul.mubr.bf16.gmra.mrb[0].mxu0 %v1207
        %v1321 = vpop.f32.mrb[0].mxu0
        %v1322 = vadd.f32 0.0, %v1321
        %v1323 = vpop.f32.mrb[0].mxu0
        %v1324 = vpop.f32.mrb[0].mxu0
        %v1325 = vadd.f32 0.0, %v1324
        %v1326 = vpop.f32.mrb[0].mxu0
        %1327 = vmatprep.mubr.bf16.mxu0 0
        %1328 = vmatmul.mubr.bf16.gmra.mrb[0].mxu0 %v1208
        %v1329 = vpop.f32.mrb[0].mxu0
        %v1330 = vadd.f32 0.0, %v1329
        %v1331 = vpop.f32.mrb[0].mxu0
        %v1332 = vpop.f32.mrb[0].mxu0
        %v1333 = vadd.f32 0.0, %v1332
        %v1334 = vpop.f32.mrb[0].mxu0
        %1335 = vmatprep.mubr.bf16.mxu0 0
        %1336 = vmatmul.mubr.bf16.gmra.mrb[0].mxu0 %v1209
        %v1337 = vpop.f32.mrb[0].mxu0
        %v1338 = vadd.f32 0.0, %v1337
        %v1339 = vpop.f32.mrb[0].mxu0
        %v1340 = vpop.f32.mrb[0].mxu0
        %v1341 = vadd.f32 0.0, %v1340
        %v1342 = vpop.f32.mrb[0].mxu0
        %1343 = vmatprep.mubr.bf16.mxu0 0
        %1344 = vmatmul.mubr.bf16.gmra.mrb[0].mxu0 %v1210
        %v1345 = vpop.f32.mrb[0].mxu0
        %v1346 = vadd.f32 0.0, %v1345
        %v1347 = vpop.f32.mrb[0].mxu0
        %v1348 = vpop.f32.mrb[0].mxu0
        %v1349 = vadd.f32 0.0, %v1348
        %v1350 = vpop.f32.mrb[0].mxu0
        %1351 = vmatprep.mubr.bf16.mxu0 0
        %1352 = vmatmul.mubr.bf16.gmra.mrb[0].mxu0 %v1211
        %v1353 = vpop.f32.mrb[0].mxu0
        %v1354 = vadd.f32 0.0, %v1353
        %v1355 = vpop.f32.mrb[0].mxu0
        %v1356 = vpop.f32.mrb[0].mxu0
        %v1357 = vadd.f32 0.0, %v1356
        %v1358 = vpop.f32.mrb[0].mxu0
        %1359 = vmatprep.mubr.bf16.mxu0 0
        %1360 = vmatmul.mubr.bf16.gmra.mrb[0].mxu0 %v1212
        %v1361 = vpop.f32.mrb[0].mxu0
        %v1362 = vadd.f32 0.0, %v1361
        %v1363 = vpop.f32.mrb[0].mxu0
        %v1364 = vpop.f32.mrb[0].mxu0
        %v1365 = vadd.f32 0.0, %v1364
        %v1366 = vpop.f32.mrb[0].mxu0
        %1367 = vmatprep.mubr.bf16.mxu0 0
        %1368 = vmatmul.mubr.bf16.gmra.mrb[0].mxu0 %v1213
        %v1369 = vpop.f32.mrb[0].mxu0
        %v1370 = vadd.f32 0.0, %v1369
        %v1371 = vpop.f32.mrb[0].mxu0
        %v1372 = vpop.f32.mrb[0].mxu0
        %v1373 = vadd.f32 0.0, %v1372
        %v1374 = vpop.f32.mrb[0].mxu0
        %1375 = vdwg.mxu0
        %v1376 = vpack.c.bf16 %v1317, %v1314
        %v1377 = vpack.c.bf16 %v1325, %v1322
        %v1378 = vpack.c.bf16 %v1333, %v1330
        %v1379 = vpack.c.bf16 %v1341, %v1338
        %v1380 = vpack.c.bf16 %v1349, %v1346
        %v1381 = vpack.c.bf16 %v1357, %v1354
        %v1382 = vpack.c.bf16 %v1365, %v1362
        %v1383 = vpack.c.bf16 %v1373, %v1370
        %v1384 = vshrl.u32 %v1182, 16
        %v1385 = vpack.i.b16 %v1384, %v1384
        %v1387 = vlaneseq
        %v1388 = vshrl.u32 %v1387, 7
        %v1389 = vsub.s32 2, %v1388
        %v1390 = vrot.slane %v1385, %v1389
        %v1391 = vadd.bf16 %v1376, %v1390
        %v1392 = vadd.bf16 %v1377, %v1390
        %v1393 = vadd.bf16 %v1378, %v1390
        %v1394 = vadd.bf16 %v1379, %v1390
        %v1395 = vadd.bf16 %v1380, %v1390
        %v1396 = vadd.bf16 %v1381, %v1390
        %v1397 = vadd.bf16 %v1382, %v1390
        %v1398 = vadd.bf16 %v1383, %v1390
        %v1399 = vmax.bf16 %v1391, 0
        %v1400 = vmax.bf16 %v1392, 0
        %v1401 = vmax.bf16 %v1393, 0
        %v1402 = vmax.bf16 %v1394, 0
        %v1403 = vmax.bf16 %v1395, 0
        %v1404 = vmax.bf16 %v1396, 0
        %v1405 = vmax.bf16 %v1397, 0
        %v1406 = vmax.bf16 %v1398, 0
        %v1407 = vadd.bf16 %v617, %v1399
        %v1408 = vadd.bf16 %v618, %v1400
        %v1409 = vadd.bf16 %v619, %v1401
        %v1410 = vadd.bf16 %v620, %v1402
        %v1411 = vadd.bf16 %v621, %v1403
        %v1412 = vadd.bf16 %v622, %v1404
        %v1413 = vadd.bf16 %v623, %v1405
        %v1414 = vadd.bf16 %v624, %v1406
        %s1415 = scalar_lea.vmem [#allocation2], 320
        %v1416 = vld [vmem:[%s1415] sm:$0xf]
        %v1417 = vld [vmem:[%s1415 + $0x4] sm:$0xf]
        %v1418 = vld [vmem:[%s1415 + $0x8] sm:$0xf]
        %v1419 = vld [vmem:[%s1415 + $0xc] sm:$0xf]
        %v1420 = vld [vmem:[%s1415 + $0x10] sm:$0xf]
        %v1421 = vld [vmem:[%s1415 + $0x14] sm:$0xf]
        %v1422 = vld [vmem:[%s1415 + $0x18] sm:$0xf]
        %v1423 = vld [vmem:[%s1415 + $0x1c] sm:$0xf]
        %v1424 = vld [vmem:[%s1415 + $0x20] sm:$0xf]
        %v1425 = vld [vmem:[%s1415 + $0x24] sm:$0xf]
        %v1426 = vld [vmem:[%s1415 + $0x28] sm:$0xf]
        %v1427 = vld [vmem:[%s1415 + $0x2c] sm:$0xf]
        %v1428 = vld [vmem:[%s1415 + $0x30] sm:$0xf]
        %v1429 = vld [vmem:[%s1415 + $0x34] sm:$0xf]
        %v1430 = vld [vmem:[%s1415 + $0x38] sm:$0xf]
        %v1431 = vld [vmem:[%s1415 + $0x3c] sm:$0xf]
        %v1448 = vunpack.c.l.b16 %v1416
        %v1449 = vunpack.c.l.b16 %v1417
        %v1450 = vunpack.c.l.b16 %v1418
        %v1451 = vunpack.c.l.b16 %v1419
        %v1452 = vunpack.c.l.b16 %v1420
        %v1453 = vunpack.c.l.b16 %v1421
        %v1454 = vunpack.c.l.b16 %v1422
        %v1455 = vunpack.c.l.b16 %v1423
        %v1456 = vunpack.c.l.b16 %v1424
        %v1457 = vunpack.c.l.b16 %v1425
        %v1458 = vunpack.c.l.b16 %v1426
        %v1459 = vunpack.c.l.b16 %v1427
        %v1460 = vunpack.c.l.b16 %v1428
        %v1461 = vunpack.c.l.b16 %v1429
        %v1462 = vunpack.c.l.b16 %v1430
        %v1463 = vunpack.c.l.b16 %v1431
        %v1464 = vpack.c.b16 %v1449, %v1448
        %v1465 = vpack.c.b16 %v1451, %v1450
        %v1466 = vpack.c.b16 %v1453, %v1452
        %v1467 = vpack.c.b16 %v1455, %v1454
        %v1468 = vpack.c.b16 %v1457, %v1456
        %v1469 = vpack.c.b16 %v1459, %v1458
        %v1470 = vpack.c.b16 %v1461, %v1460
        %v1471 = vpack.c.b16 %v1463, %v1462
        %1480 = vmatprep.subr.bf16.mxu0 0
        %1481 = vmatpush1.bf16.msra.mxu0 %v1464
        %1482 = vmatprep.subr.bf16.mxu0 0
        %1483 = vmatpush1.bf16.msra.mxu0 %v1465
        %1484 = vmatprep.subr.bf16.mxu0 0
        %1485 = vmatpush1.bf16.msra.mxu0 %v1466
        %1486 = vmatprep.subr.bf16.mxu0 0
        %1487 = vmatpush1.bf16.msra.mxu0 %v1467
        %1488 = vmatprep.subr.bf16.mxu0 0
        %1489 = vmatpush1.bf16.msra.mxu0 %v1468
        %1490 = vmatprep.subr.bf16.mxu0 0
        %1491 = vmatpush1.bf16.msra.mxu0 %v1469
        %1492 = vmatprep.subr.bf16.mxu0 0
        %1493 = vmatpush1.bf16.msra.mxu0 %v1470
        %1494 = vmatprep.subr.bf16.mxu0 0
        %1495 = vmatpush1.bf16.msra.mxu0 %v1471
        %1496 = vmatprep.subr.bf16.mxu0 0
        %1497 = vmatpush1.bf16.msra.mxu0 0
        %1498 = vmatprep.subr.bf16.mxu0 0
        %1499 = vmatpush1.bf16.msra.mxu0 0
        %1500 = vmatprep.subr.bf16.mxu0 0
        %1501 = vmatpush1.bf16.msra.mxu0 0
        %1502 = vmatprep.subr.bf16.mxu0 0
        %1503 = vmatpush1.bf16.msra.mxu0 0
        %1504 = vmatprep.subr.bf16.mxu0 0
        %1505 = vmatpush1.bf16.msra.mxu0 0
        %1506 = vmatprep.subr.bf16.mxu0 0
        %1507 = vmatpush1.bf16.msra.mxu0 0
        %1508 = vmatprep.subr.bf16.mxu0 0
        %1509 = vmatpush1.bf16.msra.mxu0 0
        %1510 = vmatprep.subr.bf16.mxu0 0
        %1511 = vmatpush1.bf16.msra.mxu0 0
        %1512 = vmatprep.mubr.bf16.mxu0 0
        %1513 = vmatmul.mubr.bf16.gmra.mrb[0].mxu0 %v1407
        %v1514 = vpop.f32.mrb[0].mxu0
        %v1515 = vadd.f32 0.0, %v1514
        %v1516 = vpop.f32.mrb[0].mxu0
        %v1517 = vpop.f32.mrb[0].mxu0
        %v1518 = vadd.f32 0.0, %v1517
        %v1519 = vpop.f32.mrb[0].mxu0
        %1520 = vmatprep.mubr.bf16.mxu0 0
        %1521 = vmatmul.mubr.bf16.gmra.mrb[0].mxu0 %v1408
        %v1522 = vpop.f32.mrb[0].mxu0
        %v1523 = vadd.f32 0.0, %v1522
        %v1524 = vpop.f32.mrb[0].mxu0
        %v1525 = vpop.f32.mrb[0].mxu0
        %v1526 = vadd.f32 0.0, %v1525
        %v1527 = vpop.f32.mrb[0].mxu0
        %1528 = vmatprep.mubr.bf16.mxu0 0
        %1529 = vmatmul.mubr.bf16.gmra.mrb[0].mxu0 %v1409
        %v1530 = vpop.f32.mrb[0].mxu0
        %v1531 = vadd.f32 0.0, %v1530
        %v1532 = vpop.f32.mrb[0].mxu0
        %v1533 = vpop.f32.mrb[0].mxu0
        %v1534 = vadd.f32 0.0, %v1533
        %v1535 = vpop.f32.mrb[0].mxu0
        %1536 = vmatprep.mubr.bf16.mxu0 0
        %1537 = vmatmul.mubr.bf16.gmra.mrb[0].mxu0 %v1410
        %v1538 = vpop.f32.mrb[0].mxu0
        %v1539 = vadd.f32 0.0, %v1538
        %v1540 = vpop.f32.mrb[0].mxu0
        %v1541 = vpop.f32.mrb[0].mxu0
        %v1542 = vadd.f32 0.0, %v1541
        %v1543 = vpop.f32.mrb[0].mxu0
        %1544 = vmatprep.mubr.bf16.mxu0 0
        %1545 = vmatmul.mubr.bf16.gmra.mrb[0].mxu0 %v1411
        %v1546 = vpop.f32.mrb[0].mxu0
        %v1547 = vadd.f32 0.0, %v1546
        %v1548 = vpop.f32.mrb[0].mxu0
        %v1549 = vpop.f32.mrb[0].mxu0
        %v1550 = vadd.f32 0.0, %v1549
        %v1551 = vpop.f32.mrb[0].mxu0
        %1552 = vmatprep.mubr.bf16.mxu0 0
        %1553 = vmatmul.mubr.bf16.gmra.mrb[0].mxu0 %v1412
        %v1554 = vpop.f32.mrb[0].mxu0
        %v1555 = vadd.f32 0.0, %v1554
        %v1556 = vpop.f32.mrb[0].mxu0
        %v1557 = vpop.f32.mrb[0].mxu0
        %v1558 = vadd.f32 0.0, %v1557
        %v1559 = vpop.f32.mrb[0].mxu0
        %1560 = vmatprep.mubr.bf16.mxu0 0
        %1561 = vmatmul.mubr.bf16.gmra.mrb[0].mxu0 %v1413
        %v1562 = vpop.f32.mrb[0].mxu0
        %v1563 = vadd.f32 0.0, %v1562
        %v1564 = vpop.f32.mrb[0].mxu0
        %v1565 = vpop.f32.mrb[0].mxu0
        %v1566 = vadd.f32 0.0, %v1565
        %v1567 = vpop.f32.mrb[0].mxu0
        %1568 = vmatprep.mubr.bf16.mxu0 0
        %1569 = vmatmul.mubr.bf16.gmra.mrb[0].mxu0 %v1414
        %v1570 = vpop.f32.mrb[0].mxu0
        %v1571 = vadd.f32 0.0, %v1570
        %v1572 = vpop.f32.mrb[0].mxu0
        %v1573 = vpop.f32.mrb[0].mxu0
        %v1574 = vadd.f32 0.0, %v1573
        %v1575 = vpop.f32.mrb[0].mxu0
        %1576 = vdwg.mxu0
        %v1577 = vpack.c.bf16 %v1518, %v1515
        %v1578 = vpack.c.bf16 %v1526, %v1523
        %v1579 = vpack.c.bf16 %v1534, %v1531
        %v1580 = vpack.c.bf16 %v1542, %v1539
        %v1581 = vpack.c.bf16 %v1550, %v1547
        %v1582 = vpack.c.bf16 %v1558, %v1555
        %v1583 = vpack.c.bf16 %v1566, %v1563
        %v1584 = vpack.c.bf16 %v1574, %v1571
        %v1585 = vld [vmem:[%s3] sm:$0x8]
        %v1587 = vpack.i.b16 %v1585, %v1585
        %v1589 = vlaneseq
        %v1590 = vshrl.u32 %v1589, 7
        %v1591 = vsub.s32 3, %v1590
        %v1592 = vrot.slane %v1587, %v1591
        %v1593 = vadd.bf16 %v1577, %v1592
        %v1594 = vadd.bf16 %v1578, %v1592
        %v1595 = vadd.bf16 %v1579, %v1592
        %v1596 = vadd.bf16 %v1580, %v1592
        %v1597 = vadd.bf16 %v1581, %v1592
        %v1598 = vadd.bf16 %v1582, %v1592
        %v1599 = vadd.bf16 %v1583, %v1592
        %v1600 = vadd.bf16 %v1584, %v1592
        %v1601 = vmax.bf16 %v1593, 0
        %v1602 = vmax.bf16 %v1594, 0
        %v1603 = vmax.bf16 %v1595, 0
        %v1604 = vmax.bf16 %v1596, 0
        %v1605 = vmax.bf16 %v1597, 0
        %v1606 = vmax.bf16 %v1598, 0
        %v1607 = vmax.bf16 %v1599, 0
        %v1608 = vmax.bf16 %v1600, 0
        %v1617 = vunpack.c.l.b16 %v1601
        %v1618 = vunpack.c.h.b16 %v1601
        %v1619 = vunpack.c.l.b16 %v1602
        %v1620 = vunpack.c.h.b16 %v1602
        %v1621 = vunpack.c.l.b16 %v1603
        %v1622 = vunpack.c.h.b16 %v1603
        %v1623 = vunpack.c.l.b16 %v1604
        %v1624 = vunpack.c.h.b16 %v1604
        %v1625 = vunpack.c.l.b16 %v1605
        %v1626 = vunpack.c.h.b16 %v1605
        %v1627 = vunpack.c.l.b16 %v1606
        %v1628 = vunpack.c.h.b16 %v1606
        %v1629 = vunpack.c.l.b16 %v1607
        %v1630 = vunpack.c.h.b16 %v1607
        %v1631 = vunpack.c.l.b16 %v1608
        %v1632 = vunpack.c.h.b16 %v1608
        %v1633 = vpack.c.b16 %v1617, %v1617
        %v1634 = vpack.c.b16 %v1618, %v1618
        %v1635 = vpack.c.b16 %v1619, %v1619
        %v1636 = vpack.c.b16 %v1620, %v1620
        %v1637 = vpack.c.b16 %v1621, %v1621
        %v1638 = vpack.c.b16 %v1622, %v1622
        %v1639 = vpack.c.b16 %v1623, %v1623
        %v1640 = vpack.c.b16 %v1624, %v1624
        %v1641 = vpack.c.b16 %v1625, %v1625
        %v1642 = vpack.c.b16 %v1626, %v1626
        %v1643 = vpack.c.b16 %v1627, %v1627
        %v1644 = vpack.c.b16 %v1628, %v1628
        %v1645 = vpack.c.b16 %v1629, %v1629
        %v1646 = vpack.c.b16 %v1630, %v1630
        %v1647 = vpack.c.b16 %v1631, %v1631
        %v1648 = vpack.c.b16 %v1632, %v1632
        %1665 = vst [vmem:[%s206] sm:$0xf] %v1633
        %1666 = vst [vmem:[%s206 + $0x4] sm:$0xf] %v1634
        %1667 = vst [vmem:[%s206 + $0x8] sm:$0xf] %v1635
        %1668 = vst [vmem:[%s206 + $0xc] sm:$0xf] %v1636
        %1669 = vst [vmem:[%s206 + $0x10] sm:$0xf] %v1637
        %1670 = vst [vmem:[%s206 + $0x14] sm:$0xf] %v1638
        %1671 = vst [vmem:[%s206 + $0x18] sm:$0xf] %v1639
        %1672 = vst [vmem:[%s206 + $0x1c] sm:$0xf] %v1640
        %1673 = vst [vmem:[%s206 + $0x20] sm:$0xf] %v1641
        %1674 = vst [vmem:[%s206 + $0x24] sm:$0xf] %v1642
        %1675 = vst [vmem:[%s206 + $0x28] sm:$0xf] %v1643
        %1676 = vst [vmem:[%s206 + $0x2c] sm:$0xf] %v1644
        %1677 = vst [vmem:[%s206 + $0x30] sm:$0xf] %v1645
        %1678 = vst [vmem:[%s206 + $0x34] sm:$0xf] %v1646
        %1679 = vst [vmem:[%s206 + $0x38] sm:$0xf] %v1647
        %1680 = vst [vmem:[%s206 + $0x3c] sm:$0xf] %v1648
        %s1681 = sand.u32 %s116, 1
        %s1682 = scalar_lea.sflag [#allocation4], %s1681
        %s1683 = sand.u32 %s116, 1
        %s1684 = smul.addr %s1683, 64
        %s1685 = scalar_lea.vmem [#allocation5], %s1684
        // Predicated region
        $region41: #{tpu_custom_call.1} parent=35 // pred_check
          %p1686 = pneg %p126
        $region42: #{tpu_custom_call.1} parent=35 // pred_check_branch
          %1688 = sbr.rel (%p1686) target = $region44
        $region43: #{tpu_custom_call.1} parent=35 // pred_region
          %s1689 = smul.u32 16, %s19
          %s1691 = ssub.s32 1024, 1024
          %1692 = vsyncadd %s1682, %s1691
          %s1693 = smul.addr %s1689, 64
          %s1694 = scalar_lea.hbm %s4, %s1693
          %s1695 = sshll.u32 %s1685, 4
          %s1696 = int_to_ptr.vmem [resolvable:$true] %s1695
          %1701 = dma.vmem_to_hbm [thread:$0]  %s1696, 1024, %s1694, %s1682, 64, 64, 4
        $region44: #{tpu_custom_call.1} parent=35 // pred_fallthru
          _
      $region36: #{tpu_custom_call.1} parent=5 // pred_fallthru
        _
      %p1702 = scmp.le.s32.totalorder 2, %s14
      // Predicated region
      $region45: #{tpu_custom_call.1} parent=5 // pred_check
        %p1703 = pneg %p1702
      $region46: #{tpu_custom_call.1} parent=5 // pred_check_branch
        %1705 = sbr.rel (%p1703) target = $region48
      $region47: #{tpu_custom_call.1} parent=5 // pred_region
        %s1706 = ssub.s32 %s14, 2
        // Predicated region
        $region49: #{tpu_custom_call.1} parent=47 // pred_check
          %p1707 = pneg %p132
        $region50: #{tpu_custom_call.1} parent=47 // pred_check_branch
          %1709 = sbr.rel (%p1707) target = $region52
        $region51: #{tpu_custom_call.1} parent=47 // pred_region
          %s1710 = sand.u32 %s117, 1
          %s1711 = scalar_lea.sflag [#allocation4], %s1710
          %s1712 = sand.u32 %s117, 1
          %s1713 = smul.addr %s1712, 64
          %s1714 = scalar_lea.vmem [#allocation5], %s1713
          %1715 = dma.done %s1711, 1024
        $region52: #{tpu_custom_call.1} parent=47 // pred_fallthru
          _
      $region48: #{tpu_custom_call.1} parent=5 // pred_fallthru
        _
    $region6: #{tpu_custom_call.1} parent=1 // loop_footer
      %s18 = sadd.s32 1, %s14
    $region7: #{tpu_custom_call.1} parent=1 // loop_footer_branch
      %13 = sbr.rel target = $region3
    $region8: #{tpu_custom_call.1} parent=1 // loop_exit
      _
    %1716 = vsyncpa [#allocation3], 1
    %s1717 = scalar_lea.sflag [#allocation3], 1
    %1718 = vsyncpa %s1717, 1
    %1719 = vsyncpa [#allocation4], 1
    %s1720 = scalar_lea.sflag [#allocation4], 1
    %1721 = vsyncpa %s1720, 1

</llo_original>
